<compile_context>
chip_gen: v6e
topology: v6e:2x2x1
jax: 0.10.0
libtpu: 0.0.40
codegen_flags: <defaults>
</compile_context>

<pallas_src>
import functools

import jax
import jax.numpy as jnp
from jax import lax
from jax.experimental import pallas as pl
from jax.experimental.pallas import tpu as pltpu


def _mha_kernel(x_ref, wqkv_ref, wp_ref, bp_ref, o_ref, *, B, T, H, hs):
    # x_ref    : (B*T, C)           activations (batch flattened into sublanes)
    # wqkv_ref : (3*H*hs, C)        rows [0,H*hs)=Q, [H*hs,2*H*hs)=K, rest=V
    #                               (torch Linear (out_features, in_features) layout)
    # wp_ref   : (n_embed, d_model) torch Linear layout
    # bp_ref   : (1, n_embed)
    # o_ref    : (B*T, n_embed)
    contract_last = (((1,), (1,)), ((), ()))   # A @ B.T (contract last dims)
    d_model = H * hs
    scale = hs ** -0.5

    x = x_ref[...]                                                     # (B*T, C)

    # --- single fused QKV projection ------------------------------------
    qkv = lax.dot_general(x, wqkv_ref[...], contract_last,
                          preferred_element_type=jnp.float32)          # (B*T, 3*d_model)

    # --- per (batch, head) attention (tiny, fully unrolled) --------------
    batch_rows = []
    for b in range(B):                         # B = 2
        rows = qkv[b * T:(b + 1) * T, :]                               # (T, 3*d_model)
        head_cols = []
        for h in range(H):                     # H = 4
            q = rows[:, h * hs:(h + 1) * hs]                           # (T, hs)
            k = rows[:, d_model + h * hs:d_model + (h + 1) * hs]       # (T, hs)
            v = rows[:, 2 * d_model + h * hs:2 * d_model + (h + 1) * hs]

            s = lax.dot_general(q, k, contract_last,
                                preferred_element_type=jnp.float32) * scale   # (T, T)
            m = jnp.max(s, axis=-1, keepdims=True)
            e = jnp.exp(s - m)
            denom = jnp.sum(e, axis=-1, keepdims=True)                 # (T, 1)

            # Un-normalized (e @ v), then deferred normalization with the EUP
            # approximate reciprocal (keeps the divide off the VALU).
            att = jnp.dot(e, v, preferred_element_type=jnp.float32)    # (T, hs)
            att = att * pl.reciprocal(denom, approx=True)
            head_cols.append(att)
        batch_rows.append(jnp.concatenate(head_cols, axis=-1))         # (T, d_model)
    heads = jnp.concatenate(batch_rows, axis=0)                        # (B*T, d_model)

    # --- single fused output projection + bias, one contiguous store -----
    out = lax.dot_general(heads, wp_ref[...], contract_last,
                          preferred_element_type=jnp.float32)          # (B*T, n_embed)
    o_ref[...] = (out + bp_ref[...]).astype(o_ref.dtype)


def multihead_attention(x, wq, wk, wv, w_proj, b_proj):
    """x: [B, T, vec_size]; wq/wk/wv: [H, head_size, vec_size] (torch layout);
    w_proj: [n_embed, d_model]; b_proj: [n_embed].  Returns [B, T, n_embed]."""
    B, T, C = x.shape
    H, hs, _ = wq.shape
    n_embed, d_model = w_proj.shape

    # Stack Q/K/V weights into one (3*H*hs, C) matrix (stays in torch (out,in) layout).
    wqkv = jnp.concatenate([wq.reshape(H * hs, C),
                            wk.reshape(H * hs, C),
                            wv.reshape(H * hs, C)], axis=0)
    x2d = x.reshape(B * T, C)                  # batch flattened into sublanes (free)
    bp = b_proj.reshape(1, n_embed)

    flops = (2 * B * T * C * 3 * H * hs        # fused QKV projection
             + 2 * 2 * B * H * T * T * hs      # q@k.T and e@v
             + 2 * B * T * d_model * n_embed)  # fused output projection
    transcendentals = B * H * T * (T + 1)      # exp + reciprocal
    bytes_accessed = (int(x2d.size) + int(wqkv.size) + int(w_proj.size)
                      + int(bp.size) + B * T * n_embed) * 4

    vmem_spec = pl.BlockSpec(memory_space=pltpu.MemorySpace.VMEM)

    out2d = pl.pallas_call(
        functools.partial(_mha_kernel, B=B, T=T, H=H, hs=hs),
        out_shape=jax.ShapeDtypeStruct((B * T, n_embed), x.dtype),
        in_specs=[vmem_spec, vmem_spec, vmem_spec, vmem_spec],
        out_specs=vmem_spec,
        cost_estimate=pl.CostEstimate(flops=flops,
                                      transcendentals=transcendentals,
                                      bytes_accessed=bytes_accessed),
    )(x2d, wqkv, w_proj, bp)
    return out2d.reshape(B, T, n_embed)


if __name__ == "__main__":
    # Small shapes consistent with the module: batch=2, seq=8, vec_size=32,
    # 4 heads of size 8 (d_model = 32), n_embed = 32.
    B, T = 2, 8
    vec_size = 32
    num_heads, head_size = 4, 8
    d_model = num_heads * head_size
    n_embed = 32

    key = jax.random.PRNGKey(0)
    kx, kq, kk, kv, kp, kb = jax.random.split(key, 6)
    x = jax.random.normal(kx, (B, T, vec_size), dtype=jnp.float32)
    wq = jax.random.normal(kq, (num_heads, head_size, vec_size), dtype=jnp.float32) * 0.1
    wk = jax.random.normal(kk, (num_heads, head_size, vec_size), dtype=jnp.float32) * 0.1
    wv = jax.random.normal(kv, (num_heads, head_size, vec_size), dtype=jnp.float32) * 0.1
    w_proj = jax.random.normal(kp, (n_embed, d_model), dtype=jnp.float32) * 0.1
    b_proj = jax.random.normal(kb, (n_embed,), dtype=jnp.float32) * 0.1

    out = jax.block_until_ready(multihead_attention(x, wq, wk, wv, w_proj, b_proj))

    # Pure-JAX reference (dropout = identity, scale = head_size**-0.5).
    hp = jax.lax.Precision.HIGHEST
    q = jnp.einsum("btc,hdc->bhtd", x, wq, precision=hp)
    k = jnp.einsum("btc,hdc->bhtd", x, wk, precision=hp)
    v = jnp.einsum("btc,hdc->bhtd", x, wv, precision=hp)
    s = jnp.einsum("bhtd,bhsd->bhts", q, k, precision=hp) * (head_size ** -0.5)
    p = jax.nn.softmax(s, axis=-1)
    att = jnp.einsum("bhts,bhsd->bhtd", p, v, precision=hp)          # (B, H, T, hs)
    cat = jnp.transpose(att, (0, 2, 1, 3)).reshape(B, T, d_model)    # concat over heads
    ref = jnp.einsum("btd,ed->bte", cat, w_proj, precision=hp) + b_proj[None, None, :]

    assert out.shape == (B, T, n_embed)
    # Tolerance allows for the EUP approximate-reciprocal softmax normalization.
    assert jnp.allclose(out, ref, atol=2e-3, rtol=2e-3), float(jnp.max(jnp.abs(out - ref)))

    print("KERNEL_OK")
</pallas_src>

<mosaic_0001>
module attributes {stable_mosaic.version = 11 : i64} {
  func.func @_mha_kernel(%arg0: memref<16x32xf32, #tpu.memory_space<vmem>>, %arg1: memref<96x32xf32, #tpu.memory_space<vmem>>, %arg2: memref<32x32xf32, #tpu.memory_space<vmem>>, %arg3: memref<1x32xf32, #tpu.memory_space<vmem>>, %arg4: memref<16x32xf32, #tpu.memory_space<vmem>>) attributes {dimension_semantics = [], scalar_prefetch = 0 : i64, scratch_operands = 0 : i64, tpu.core_type = #tpu.core_type<tc>} {
    %c0 = arith.constant 0 : index
    %c0_0 = arith.constant 0 : index
    %0 = vector.load %arg0[%c0, %c0_0] : memref<16x32xf32, #tpu.memory_space<vmem>>, vector<16x32xf32>
    %c0_1 = arith.constant 0 : index
    %c0_2 = arith.constant 0 : index
    %1 = vector.load %arg1[%c0_1, %c0_2] : memref<96x32xf32, #tpu.memory_space<vmem>>, vector<96x32xf32>
    %cst = arith.constant dense<0.000000e+00> : vector<16x96xf32>
    %2 = tpu.matmul %0, %1, %cst {dimension_numbers = #tpu.dot_dimension_numbers<[1], [1], [0], [0], [0, 0, 1, 0], [], []>} : vector<16x32xf32>, vector<96x32xf32>, vector<16x96xf32> -> vector<16x96xf32>
    %3 = vector.extract_strided_slice %2 {offsets = [0, 0], sizes = [8, 96], strides = [1, 1]} : vector<16x96xf32> to vector<8x96xf32>
    %4 = vector.extract_strided_slice %3 {offsets = [0, 0], sizes = [8, 8], strides = [1, 1]} : vector<8x96xf32> to vector<8x8xf32>
    %5 = vector.extract_strided_slice %3 {offsets = [0, 32], sizes = [8, 8], strides = [1, 1]} : vector<8x96xf32> to vector<8x8xf32>
    %6 = vector.extract_strided_slice %3 {offsets = [0, 64], sizes = [8, 8], strides = [1, 1]} : vector<8x96xf32> to vector<8x8xf32>
    %cst_3 = arith.constant dense<0.000000e+00> : vector<8x8xf32>
    %7 = tpu.matmul %4, %5, %cst_3 {dimension_numbers = #tpu.dot_dimension_numbers<[1], [1], [0], [0], [0, 0, 1, 0], [], []>} : vector<8x8xf32>, vector<8x8xf32>, vector<8x8xf32> -> vector<8x8xf32>
    %cst_4 = arith.constant 0.353553385 : f32
    %8 = vector.broadcast %cst_4 : f32 to vector<8x8xf32>
    %9 = arith.mulf %7, %8 : vector<8x8xf32>
    %cst_5 = arith.constant dense<0xFF800000> : vector<8xf32>
    %10 = vector.multi_reduction <maximumf>, %9, %cst_5 [1] : vector<8x8xf32> to vector<8xf32>
    %11 = vector.shape_cast %10 : vector<8xf32> to vector<8x1xf32>
    %12 = vector.broadcast %11 : vector<8x1xf32> to vector<8x8xf32>
    %13 = arith.subf %9, %12 : vector<8x8xf32>
    %14 = math.exp %13 : vector<8x8xf32>
    %cst_6 = arith.constant dense<0.000000e+00> : vector<8xf32>
    %15 = vector.multi_reduction <add>, %14, %cst_6 [1] : vector<8x8xf32> to vector<8xf32>
    %16 = vector.shape_cast %15 : vector<8xf32> to vector<8x1xf32>
    %cst_7 = arith.constant dense<0.000000e+00> : vector<8x8xf32>
    %17 = tpu.matmul %14, %6, %cst_7 {dimension_numbers = #tpu.dot_dimension_numbers<[1], [0], [0], [1], [0, 0, 1, 1], [], []>} : vector<8x8xf32>, vector<8x8xf32>, vector<8x8xf32> -> vector<8x8xf32>
    %18 = tpu.reciprocal %16 {approx = true} : vector<8x1xf32> -> vector<8x1xf32>
    %19 = vector.broadcast %18 : vector<8x1xf32> to vector<8x8xf32>
    %20 = arith.mulf %17, %19 : vector<8x8xf32>
    %21 = vector.extract_strided_slice %3 {offsets = [0, 8], sizes = [8, 8], strides = [1, 1]} : vector<8x96xf32> to vector<8x8xf32>
    %22 = vector.extract_strided_slice %3 {offsets = [0, 40], sizes = [8, 8], strides = [1, 1]} : vector<8x96xf32> to vector<8x8xf32>
    %23 = vector.extract_strided_slice %3 {offsets = [0, 72], sizes = [8, 8], strides = [1, 1]} : vector<8x96xf32> to vector<8x8xf32>
    %cst_8 = arith.constant dense<0.000000e+00> : vector<8x8xf32>
    %24 = tpu.matmul %21, %22, %cst_8 {dimension_numbers = #tpu.dot_dimension_numbers<[1], [1], [0], [0], [0, 0, 1, 0], [], []>} : vector<8x8xf32>, vector<8x8xf32>, vector<8x8xf32> -> vector<8x8xf32>
    %cst_9 = arith.constant 0.353553385 : f32
    %25 = vector.broadcast %cst_9 : f32 to vector<8x8xf32>
    %26 = arith.mulf %24, %25 : vector<8x8xf32>
    %cst_10 = arith.constant dense<0xFF800000> : vector<8xf32>
    %27 = vector.multi_reduction <maximumf>, %26, %cst_10 [1] : vector<8x8xf32> to vector<8xf32>
    %28 = vector.shape_cast %27 : vector<8xf32> to vector<8x1xf32>
    %29 = vector.broadcast %28 : vector<8x1xf32> to vector<8x8xf32>
    %30 = arith.subf %26, %29 : vector<8x8xf32>
    %31 = math.exp %30 : vector<8x8xf32>
    %cst_11 = arith.constant dense<0.000000e+00> : vector<8xf32>
    %32 = vector.multi_reduction <add>, %31, %cst_11 [1] : vector<8x8xf32> to vector<8xf32>
    %33 = vector.shape_cast %32 : vector<8xf32> to vector<8x1xf32>
    %cst_12 = arith.constant dense<0.000000e+00> : vector<8x8xf32>
    %34 = tpu.matmul %31, %23, %cst_12 {dimension_numbers = #tpu.dot_dimension_numbers<[1], [0], [0], [1], [0, 0, 1, 1], [], []>} : vector<8x8xf32>, vector<8x8xf32>, vector<8x8xf32> -> vector<8x8xf32>
    %35 = tpu.reciprocal %33 {approx = true} : vector<8x1xf32> -> vector<8x1xf32>
    %36 = vector.broadcast %35 : vector<8x1xf32> to vector<8x8xf32>
    %37 = arith.mulf %34, %36 : vector<8x8xf32>
    %38 = vector.extract_strided_slice %3 {offsets = [0, 16], sizes = [8, 8], strides = [1, 1]} : vector<8x96xf32> to vector<8x8xf32>
    %39 = vector.extract_strided_slice %3 {offsets = [0, 48], sizes = [8, 8], strides = [1, 1]} : vector<8x96xf32> to vector<8x8xf32>
    %40 = vector.extract_strided_slice %3 {offsets = [0, 80], sizes = [8, 8], strides = [1, 1]} : vector<8x96xf32> to vector<8x8xf32>
    %cst_13 = arith.constant dense<0.000000e+00> : vector<8x8xf32>
    %41 = tpu.matmul %38, %39, %cst_13 {dimension_numbers = #tpu.dot_dimension_numbers<[1], [1], [0], [0], [0, 0, 1, 0], [], []>} : vector<8x8xf32>, vector<8x8xf32>, vector<8x8xf32> -> vector<8x8xf32>
    %cst_14 = arith.constant 0.353553385 : f32
    %42 = vector.broadcast %cst_14 : f32 to vector<8x8xf32>
    %43 = arith.mulf %41, %42 : vector<8x8xf32>
    %cst_15 = arith.constant dense<0xFF800000> : vector<8xf32>
    %44 = vector.multi_reduction <maximumf>, %43, %cst_15 [1] : vector<8x8xf32> to vector<8xf32>
    %45 = vector.shape_cast %44 : vector<8xf32> to vector<8x1xf32>
    %46 = vector.broadcast %45 : vector<8x1xf32> to vector<8x8xf32>
    %47 = arith.subf %43, %46 : vector<8x8xf32>
    %48 = math.exp %47 : vector<8x8xf32>
    %cst_16 = arith.constant dense<0.000000e+00> : vector<8xf32>
    %49 = vector.multi_reduction <add>, %48, %cst_16 [1] : vector<8x8xf32> to vector<8xf32>
    %50 = vector.shape_cast %49 : vector<8xf32> to vector<8x1xf32>
    %cst_17 = arith.constant dense<0.000000e+00> : vector<8x8xf32>
    %51 = tpu.matmul %48, %40, %cst_17 {dimension_numbers = #tpu.dot_dimension_numbers<[1], [0], [0], [1], [0, 0, 1, 1], [], []>} : vector<8x8xf32>, vector<8x8xf32>, vector<8x8xf32> -> vector<8x8xf32>
    %52 = tpu.reciprocal %50 {approx = true} : vector<8x1xf32> -> vector<8x1xf32>
    %53 = vector.broadcast %52 : vector<8x1xf32> to vector<8x8xf32>
    %54 = arith.mulf %51, %53 : vector<8x8xf32>
    %55 = vector.extract_strided_slice %3 {offsets = [0, 24], sizes = [8, 8], strides = [1, 1]} : vector<8x96xf32> to vector<8x8xf32>
    %56 = vector.extract_strided_slice %3 {offsets = [0, 56], sizes = [8, 8], strides = [1, 1]} : vector<8x96xf32> to vector<8x8xf32>
    %57 = vector.extract_strided_slice %3 {offsets = [0, 88], sizes = [8, 8], strides = [1, 1]} : vector<8x96xf32> to vector<8x8xf32>
    %cst_18 = arith.constant dense<0.000000e+00> : vector<8x8xf32>
    %58 = tpu.matmul %55, %56, %cst_18 {dimension_numbers = #tpu.dot_dimension_numbers<[1], [1], [0], [0], [0, 0, 1, 0], [], []>} : vector<8x8xf32>, vector<8x8xf32>, vector<8x8xf32> -> vector<8x8xf32>
    %cst_19 = arith.constant 0.353553385 : f32
    %59 = vector.broadcast %cst_19 : f32 to vector<8x8xf32>
    %60 = arith.mulf %58, %59 : vector<8x8xf32>
    %cst_20 = arith.constant dense<0xFF800000> : vector<8xf32>
    %61 = vector.multi_reduction <maximumf>, %60, %cst_20 [1] : vector<8x8xf32> to vector<8xf32>
    %62 = vector.shape_cast %61 : vector<8xf32> to vector<8x1xf32>
    %63 = vector.broadcast %62 : vector<8x1xf32> to vector<8x8xf32>
    %64 = arith.subf %60, %63 : vector<8x8xf32>
    %65 = math.exp %64 : vector<8x8xf32>
    %cst_21 = arith.constant dense<0.000000e+00> : vector<8xf32>
    %66 = vector.multi_reduction <add>, %65, %cst_21 [1] : vector<8x8xf32> to vector<8xf32>
    %67 = vector.shape_cast %66 : vector<8xf32> to vector<8x1xf32>
    %cst_22 = arith.constant dense<0.000000e+00> : vector<8x8xf32>
    %68 = tpu.matmul %65, %57, %cst_22 {dimension_numbers = #tpu.dot_dimension_numbers<[1], [0], [0], [1], [0, 0, 1, 1], [], []>} : vector<8x8xf32>, vector<8x8xf32>, vector<8x8xf32> -> vector<8x8xf32>
    %69 = tpu.reciprocal %67 {approx = true} : vector<8x1xf32> -> vector<8x1xf32>
    %70 = vector.broadcast %69 : vector<8x1xf32> to vector<8x8xf32>
    %71 = arith.mulf %68, %70 : vector<8x8xf32>
    %72 = tpu.concatenate %20, %37, %54, %71 in 1 : vector<8x8xf32>, vector<8x8xf32>, vector<8x8xf32>, vector<8x8xf32> -> vector<8x32xf32>
    %73 = vector.extract_strided_slice %2 {offsets = [8, 0], sizes = [8, 96], strides = [1, 1]} : vector<16x96xf32> to vector<8x96xf32>
    %74 = vector.extract_strided_slice %73 {offsets = [0, 0], sizes = [8, 8], strides = [1, 1]} : vector<8x96xf32> to vector<8x8xf32>
    %75 = vector.extract_strided_slice %73 {offsets = [0, 32], sizes = [8, 8], strides = [1, 1]} : vector<8x96xf32> to vector<8x8xf32>
    %76 = vector.extract_strided_slice %73 {offsets = [0, 64], sizes = [8, 8], strides = [1, 1]} : vector<8x96xf32> to vector<8x8xf32>
    %cst_23 = arith.constant dense<0.000000e+00> : vector<8x8xf32>
    %77 = tpu.matmul %74, %75, %cst_23 {dimension_numbers = #tpu.dot_dimension_numbers<[1], [1], [0], [0], [0, 0, 1, 0], [], []>} : vector<8x8xf32>, vector<8x8xf32>, vector<8x8xf32> -> vector<8x8xf32>
    %cst_24 = arith.constant 0.353553385 : f32
    %78 = vector.broadcast %cst_24 : f32 to vector<8x8xf32>
    %79 = arith.mulf %77, %78 : vector<8x8xf32>
    %cst_25 = arith.constant dense<0xFF800000> : vector<8xf32>
    %80 = vector.multi_reduction <maximumf>, %79, %cst_25 [1] : vector<8x8xf32> to vector<8xf32>
    %81 = vector.shape_cast %80 : vector<8xf32> to vector<8x1xf32>
    %82 = vector.broadcast %81 : vector<8x1xf32> to vector<8x8xf32>
    %83 = arith.subf %79, %82 : vector<8x8xf32>
    %84 = math.exp %83 : vector<8x8xf32>
    %cst_26 = arith.constant dense<0.000000e+00> : vector<8xf32>
    %85 = vector.multi_reduction <add>, %84, %cst_26 [1] : vector<8x8xf32> to vector<8xf32>
    %86 = vector.shape_cast %85 : vector<8xf32> to vector<8x1xf32>
    %cst_27 = arith.constant dense<0.000000e+00> : vector<8x8xf32>
    %87 = tpu.matmul %84, %76, %cst_27 {dimension_numbers = #tpu.dot_dimension_numbers<[1], [0], [0], [1], [0, 0, 1, 1], [], []>} : vector<8x8xf32>, vector<8x8xf32>, vector<8x8xf32> -> vector<8x8xf32>
    %88 = tpu.reciprocal %86 {approx = true} : vector<8x1xf32> -> vector<8x1xf32>
    %89 = vector.broadcast %88 : vector<8x1xf32> to vector<8x8xf32>
    %90 = arith.mulf %87, %89 : vector<8x8xf32>
    %91 = vector.extract_strided_slice %73 {offsets = [0, 8], sizes = [8, 8], strides = [1, 1]} : vector<8x96xf32> to vector<8x8xf32>
    %92 = vector.extract_strided_slice %73 {offsets = [0, 40], sizes = [8, 8], strides = [1, 1]} : vector<8x96xf32> to vector<8x8xf32>
    %93 = vector.extract_strided_slice %73 {offsets = [0, 72], sizes = [8, 8], strides = [1, 1]} : vector<8x96xf32> to vector<8x8xf32>
    %cst_28 = arith.constant dense<0.000000e+00> : vector<8x8xf32>
    %94 = tpu.matmul %91, %92, %cst_28 {dimension_numbers = #tpu.dot_dimension_numbers<[1], [1], [0], [0], [0, 0, 1, 0], [], []>} : vector<8x8xf32>, vector<8x8xf32>, vector<8x8xf32> -> vector<8x8xf32>
    %cst_29 = arith.constant 0.353553385 : f32
    %95 = vector.broadcast %cst_29 : f32 to vector<8x8xf32>
    %96 = arith.mulf %94, %95 : vector<8x8xf32>
    %cst_30 = arith.constant dense<0xFF800000> : vector<8xf32>
    %97 = vector.multi_reduction <maximumf>, %96, %cst_30 [1] : vector<8x8xf32> to vector<8xf32>
    %98 = vector.shape_cast %97 : vector<8xf32> to vector<8x1xf32>
    %99 = vector.broadcast %98 : vector<8x1xf32> to vector<8x8xf32>
    %100 = arith.subf %96, %99 : vector<8x8xf32>
    %101 = math.exp %100 : vector<8x8xf32>
    %cst_31 = arith.constant dense<0.000000e+00> : vector<8xf32>
    %102 = vector.multi_reduction <add>, %101, %cst_31 [1] : vector<8x8xf32> to vector<8xf32>
    %103 = vector.shape_cast %102 : vector<8xf32> to vector<8x1xf32>
    %cst_32 = arith.constant dense<0.000000e+00> : vector<8x8xf32>
    %104 = tpu.matmul %101, %93, %cst_32 {dimension_numbers = #tpu.dot_dimension_numbers<[1], [0], [0], [1], [0, 0, 1, 1], [], []>} : vector<8x8xf32>, vector<8x8xf32>, vector<8x8xf32> -> vector<8x8xf32>
    %105 = tpu.reciprocal %103 {approx = true} : vector<8x1xf32> -> vector<8x1xf32>
    %106 = vector.broadcast %105 : vector<8x1xf32> to vector<8x8xf32>
    %107 = arith.mulf %104, %106 : vector<8x8xf32>
    %108 = vector.extract_strided_slice %73 {offsets = [0, 16], sizes = [8, 8], strides = [1, 1]} : vector<8x96xf32> to vector<8x8xf32>
    %109 = vector.extract_strided_slice %73 {offsets = [0, 48], sizes = [8, 8], strides = [1, 1]} : vector<8x96xf32> to vector<8x8xf32>
    %110 = vector.extract_strided_slice %73 {offsets = [0, 80], sizes = [8, 8], strides = [1, 1]} : vector<8x96xf32> to vector<8x8xf32>
    %cst_33 = arith.constant dense<0.000000e+00> : vector<8x8xf32>
    %111 = tpu.matmul %108, %109, %cst_33 {dimension_numbers = #tpu.dot_dimension_numbers<[1], [1], [0], [0], [0, 0, 1, 0], [], []>} : vector<8x8xf32>, vector<8x8xf32>, vector<8x8xf32> -> vector<8x8xf32>
    %cst_34 = arith.constant 0.353553385 : f32
    %112 = vector.broadcast %cst_34 : f32 to vector<8x8xf32>
    %113 = arith.mulf %111, %112 : vector<8x8xf32>
    %cst_35 = arith.constant dense<0xFF800000> : vector<8xf32>
    %114 = vector.multi_reduction <maximumf>, %113, %cst_35 [1] : vector<8x8xf32> to vector<8xf32>
    %115 = vector.shape_cast %114 : vector<8xf32> to vector<8x1xf32>
    %116 = vector.broadcast %115 : vector<8x1xf32> to vector<8x8xf32>
    %117 = arith.subf %113, %116 : vector<8x8xf32>
    %118 = math.exp %117 : vector<8x8xf32>
    %cst_36 = arith.constant dense<0.000000e+00> : vector<8xf32>
    %119 = vector.multi_reduction <add>, %118, %cst_36 [1] : vector<8x8xf32> to vector<8xf32>
    %120 = vector.shape_cast %119 : vector<8xf32> to vector<8x1xf32>
    %cst_37 = arith.constant dense<0.000000e+00> : vector<8x8xf32>
    %121 = tpu.matmul %118, %110, %cst_37 {dimension_numbers = #tpu.dot_dimension_numbers<[1], [0], [0], [1], [0, 0, 1, 1], [], []>} : vector<8x8xf32>, vector<8x8xf32>, vector<8x8xf32> -> vector<8x8xf32>
    %122 = tpu.reciprocal %120 {approx = true} : vector<8x1xf32> -> vector<8x1xf32>
    %123 = vector.broadcast %122 : vector<8x1xf32> to vector<8x8xf32>
    %124 = arith.mulf %121, %123 : vector<8x8xf32>
    %125 = vector.extract_strided_slice %73 {offsets = [0, 24], sizes = [8, 8], strides = [1, 1]} : vector<8x96xf32> to vector<8x8xf32>
    %126 = vector.extract_strided_slice %73 {offsets = [0, 56], sizes = [8, 8], strides = [1, 1]} : vector<8x96xf32> to vector<8x8xf32>
    %127 = vector.extract_strided_slice %73 {offsets = [0, 88], sizes = [8, 8], strides = [1, 1]} : vector<8x96xf32> to vector<8x8xf32>
    %cst_38 = arith.constant dense<0.000000e+00> : vector<8x8xf32>
    %128 = tpu.matmul %125, %126, %cst_38 {dimension_numbers = #tpu.dot_dimension_numbers<[1], [1], [0], [0], [0, 0, 1, 0], [], []>} : vector<8x8xf32>, vector<8x8xf32>, vector<8x8xf32> -> vector<8x8xf32>
    %cst_39 = arith.constant 0.353553385 : f32
    %129 = vector.broadcast %cst_39 : f32 to vector<8x8xf32>
    %130 = arith.mulf %128, %129 : vector<8x8xf32>
    %cst_40 = arith.constant dense<0xFF800000> : vector<8xf32>
    %131 = vector.multi_reduction <maximumf>, %130, %cst_40 [1] : vector<8x8xf32> to vector<8xf32>
    %132 = vector.shape_cast %131 : vector<8xf32> to vector<8x1xf32>
    %133 = vector.broadcast %132 : vector<8x1xf32> to vector<8x8xf32>
    %134 = arith.subf %130, %133 : vector<8x8xf32>
    %135 = math.exp %134 : vector<8x8xf32>
    %cst_41 = arith.constant dense<0.000000e+00> : vector<8xf32>
    %136 = vector.multi_reduction <add>, %135, %cst_41 [1] : vector<8x8xf32> to vector<8xf32>
    %137 = vector.shape_cast %136 : vector<8xf32> to vector<8x1xf32>
    %cst_42 = arith.constant dense<0.000000e+00> : vector<8x8xf32>
    %138 = tpu.matmul %135, %127, %cst_42 {dimension_numbers = #tpu.dot_dimension_numbers<[1], [0], [0], [1], [0, 0, 1, 1], [], []>} : vector<8x8xf32>, vector<8x8xf32>, vector<8x8xf32> -> vector<8x8xf32>
    %139 = tpu.reciprocal %137 {approx = true} : vector<8x1xf32> -> vector<8x1xf32>
    %140 = vector.broadcast %139 : vector<8x1xf32> to vector<8x8xf32>
    %141 = arith.mulf %138, %140 : vector<8x8xf32>
    %142 = tpu.concatenate %90, %107, %124, %141 in 1 : vector<8x8xf32>, vector<8x8xf32>, vector<8x8xf32>, vector<8x8xf32> -> vector<8x32xf32>
    %143 = tpu.concatenate %72, %142 in 0 : vector<8x32xf32>, vector<8x32xf32> -> vector<16x32xf32>
    %c0_43 = arith.constant 0 : index
    %c0_44 = arith.constant 0 : index
    %144 = vector.load %arg2[%c0_43, %c0_44] : memref<32x32xf32, #tpu.memory_space<vmem>>, vector<32x32xf32>
    %cst_45 = arith.constant dense<0.000000e+00> : vector<16x32xf32>
    %145 = tpu.matmul %143, %144, %cst_45 {dimension_numbers = #tpu.dot_dimension_numbers<[1], [1], [0], [0], [0, 0, 1, 0], [], []>} : vector<16x32xf32>, vector<32x32xf32>, vector<16x32xf32> -> vector<16x32xf32>
    %c0_46 = arith.constant 0 : index
    %c0_47 = arith.constant 0 : index
    %146 = vector.load %arg3[%c0_46, %c0_47] : memref<1x32xf32, #tpu.memory_space<vmem>>, vector<1x32xf32>
    %147 = vector.broadcast %146 : vector<1x32xf32> to vector<16x32xf32>
    %148 = arith.addf %145, %147 : vector<16x32xf32>
    %c0_48 = arith.constant 0 : index
    %c0_49 = arith.constant 0 : index
    %149 = vector.load %arg4[%c0_48, %c0_49] : memref<16x32xf32, #tpu.memory_space<vmem>>, vector<16x32xf32>
    tpu.vector_store %arg4[%c0_48, %c0_49], %148 {strides = array<i32>} : memref<16x32xf32, #tpu.memory_space<vmem>>, vector<16x32xf32>,
    return
  }
}

</mosaic_0001>

<llo_original>
// kernel: tpu_custom_call.1
$region0: #{tpu_custom_call.1}
  #allocation0 [shape = 'u32[]', space=smem, size = 0x4, offset = 0x4, fixed_abs, tag = 'smem constant byte address 0x4 - core index']
  #allocation1 [shape = 'u32[144,128]{1,0:T(1,128)}', space=vmem, size = 0x12000, scoped, tag = 'internal scratch']
  %s0 = inlined_call_operand.vmem [shape: f32[16,32], index: 0, kind: input, shape index: {}]
  %s1 = inlined_call_operand.vmem [shape: f32[96,32], index: 1, kind: input, shape index: {}]
  %s2 = inlined_call_operand.vmem [shape: f32[32,32], index: 2, kind: input, shape index: {}]
  %s3 = inlined_call_operand.vmem [shape: f32[1,32], index: 3, kind: input, shape index: {}]
  %s4 = inlined_call_operand.hbm [shape: f32[16,32], index: 4, kind: output, shape index: {}]
  %s5 = sld [smem:[#allocation0]]
  $region26: #{tpu_custom_call.1} parent=0
    _
  %s7 = ssub.s32 1, %s5
  %s8 = scalar_select 0, %s7, %s5
  $region1: #{tpu_custom_call.1} parent=0
    #allocation2 [shape = 'u8[8192]{0}', space=vmem, size = 0x2000, scoped, tag = 'output window, operand 0, single buffered']
    #allocation3 [shape = 's32[1]{0}', space=sflag, size = 0x4, scoped, tag = 'scoped memory for tpu_custom_call.1']
    %9 = vsyncpa [#allocation3], 0
    // Predicated region
    $region2: #{tpu_custom_call.1} parent=1 // pred_check
      _
    $region3: #{tpu_custom_call.1} parent=1 // pred_check_branch
      %11 = sbr.rel (0) target = $region5
    $region4: #{tpu_custom_call.1} parent=1 // pred_region
      _
    $region5: #{tpu_custom_call.1} parent=1 // pred_fallthru
      _
    // Predicated region
    $region6: #{tpu_custom_call.1} parent=1 // pred_check
      _
    $region7: #{tpu_custom_call.1} parent=1 // pred_check_branch
      %13 = sbr.rel (0) target = $region9
    $region8: #{tpu_custom_call.1} parent=1 // pred_region
      _
    $region9: #{tpu_custom_call.1} parent=1 // pred_fallthru
      _
    // Predicated region
    $region10: #{tpu_custom_call.1} parent=1 // pred_check
      _
    $region11: #{tpu_custom_call.1} parent=1 // pred_check_branch
      %15 = sbr.rel (0) target = $region13
    $region12: #{tpu_custom_call.1} parent=1 // pred_region
      _
    $region13: #{tpu_custom_call.1} parent=1 // pred_fallthru
      _
    // Predicated region
    $region14: #{tpu_custom_call.1} parent=1 // pred_check
      _
    $region15: #{tpu_custom_call.1} parent=1 // pred_check_branch
      %17 = sbr.rel (0) target = $region17
    $region16: #{tpu_custom_call.1} parent=1 // pred_region
      _
    $region17: #{tpu_custom_call.1} parent=1 // pred_fallthru
      _
    %v18 = vld [vmem:[%s0] sm:$0xff]
    %v19 = vld [vmem:[%s0 + $0x8] sm:$0xff]
    %v20 = vld [vmem:[%s1] sm:$0xff]
    %v21 = vld [vmem:[%s1 + $0x8] sm:$0xff]
    %v22 = vld [vmem:[%s1 + $0x10] sm:$0xff]
    %v23 = vld [vmem:[%s1 + $0x18] sm:$0xff]
    %v24 = vld [vmem:[%s1 + $0x20] sm:$0xff]
    %v25 = vld [vmem:[%s1 + $0x28] sm:$0xff]
    %v26 = vld [vmem:[%s1 + $0x30] sm:$0xff]
    %v27 = vld [vmem:[%s1 + $0x38] sm:$0xff]
    %v28 = vld [vmem:[%s1 + $0x40] sm:$0xff]
    %v29 = vld [vmem:[%s1 + $0x48] sm:$0xff]
    %v30 = vld [vmem:[%s1 + $0x50] sm:$0xff]
    %v31 = vld [vmem:[%s1 + $0x58] sm:$0xff]
    %vm32 = vcmask 261120
    %v34 = vsel %vm32, %v18, 0
    %v37 = vsel %vm32, %v19, 0
    %v40 = vsel %vm32, %v20, 0
    %v43 = vsel %vm32, %v21, 0
    %v46 = vsel %vm32, %v22, 0
    %v49 = vsel %vm32, %v23, 0
    %v52 = vsel %vm32, %v24, 0
    %v55 = vsel %vm32, %v25, 0
    %v58 = vsel %vm32, %v26, 0
    %v61 = vsel %vm32, %v27, 0
    %v64 = vsel %vm32, %v28, 0
    %v67 = vsel %vm32, %v29, 0
    %v70 = vsel %vm32, %v30, 0
    %v73 = vsel %vm32, %v31, 0
    %75 = vmatprep.subr.mxu0 0.0
    %76 = vmatpush1.xpose.msra.mxu0 0.0
    %77 = vmatprep.subr.mxu0 0.0
    %78 = vmatpush1.xpose.msra.mxu0 0.0
    %79 = vmatprep.subr.mxu0 0.0
    %80 = vmatpush1.xpose.msra.mxu0 0.0
    %81 = vmatprep.subr.mxu0 0.0
    %82 = vmatpush1.xpose.msra.mxu0 0.0
    %83 = vmatprep.subr.mxu0 0.0
    %84 = vmatpush1.xpose.msra.mxu0 %v73
    %85 = vmatprep.subr.mxu0 0.0
    %86 = vmatpush1.xpose.msra.mxu0 %v70
    %87 = vmatprep.subr.mxu0 0.0
    %88 = vmatpush1.xpose.msra.mxu0 %v67
    %89 = vmatprep.subr.mxu0 0.0
    %90 = vmatpush1.xpose.msra.mxu0 %v64
    %91 = vmatprep.subr.mxu0 0.0
    %92 = vmatpush1.xpose.msra.mxu0 %v61
    %93 = vmatprep.subr.mxu0 0.0
    %94 = vmatpush1.xpose.msra.mxu0 %v58
    %95 = vmatprep.subr.mxu0 0.0
    %96 = vmatpush1.xpose.msra.mxu0 %v55
    %97 = vmatprep.subr.mxu0 0.0
    %98 = vmatpush1.xpose.msra.mxu0 %v52
    %99 = vmatprep.subr.mxu0 0.0
    %100 = vmatpush1.xpose.msra.mxu0 %v49
    %101 = vmatprep.subr.mxu0 0.0
    %102 = vmatpush1.xpose.msra.mxu0 %v46
    %103 = vmatprep.subr.mxu0 0.0
    %104 = vmatpush1.xpose.msra.mxu0 %v43
    %105 = vmatprep.subr.mxu0 0.0
    %106 = vmatpush1.xpose.msra.mxu0 %v40
    %107 = vmatprep.subr.mxu0 0.0
    %108 = vmatpush2.xpose.msra.mxu0 0.0
    %109 = vmatprep.subr.mxu0 0.0
    %110 = vmatpush2.xpose.msra.mxu0 0.0
    %111 = vmatprep.subr.mxu0 0.0
    %112 = vmatpush2.xpose.msra.mxu0 0.0
    %113 = vmatprep.subr.mxu0 0.0
    %114 = vmatpush2.xpose.msra.mxu0 0.0
    %115 = vmatprep.subr.mxu0 0.0
    %116 = vmatpush2.xpose.msra.mxu0 0.0
    %117 = vmatprep.subr.mxu0 0.0
    %118 = vmatpush2.xpose.msra.mxu0 0.0
    %119 = vmatprep.subr.mxu0 0.0
    %120 = vmatpush2.xpose.msra.mxu0 0.0
    %121 = vmatprep.subr.mxu0 0.0
    %122 = vmatpush2.xpose.msra.mxu0 0.0
    %123 = vmatprep.subr.mxu0 0.0
    %124 = vmatpush2.xpose.msra.mxu0 0.0
    %125 = vmatprep.subr.mxu0 0.0
    %126 = vmatpush2.xpose.msra.mxu0 0.0
    %127 = vmatprep.subr.mxu0 0.0
    %128 = vmatpush2.xpose.msra.mxu0 0.0
    %129 = vmatprep.subr.mxu0 0.0
    %130 = vmatpush2.xpose.msra.mxu0 0.0
    %131 = vmatprep.subr.mxu0 0.0
    %132 = vmatpush2.xpose.msra.mxu0 0.0
    %133 = vmatprep.subr.mxu0 0.0
    %134 = vmatpush2.xpose.msra.mxu0 0.0
    %135 = vmatprep.subr.mxu0 0.0
    %136 = vmatpush2.xpose.msra.mxu0 0.0
    %137 = vmatprep.subr.mxu0 0.0
    %138 = vmatpush2.xpose.msra.mxu0 0.0
    %139 = vmatprep.mubr.f32.mxu0 0.0
    %140 = vmatmul.mubr.f32.gmra.mxu0 %v34
    %v141 = vpop.f32.mrf.mxu0
    %v142 = vadd.f32 0.0, %v141
    %v143 = vpop.f32.mrf.mxu0
    %144 = vmatprep.mubr.f32.mxu0 0.0
    %145 = vmatmul.mubr.f32.gmra.mxu0 %v37
    %v146 = vpop.f32.mrf.mxu0
    %v147 = vadd.f32 0.0, %v146
    %v148 = vpop.f32.mrf.mxu0
    %149 = vdwg.mxu0
    %151 = vrot.lane.b32.xlu0 %v142, 96
    %v152 = vpop.permute.xlu0 %151
    %vm153 = vcmask 64512
    %v154 = vsel %vm153, %v142, 0
    %v156 = vsel %vm153, %v152, 0
    %158 = vmatprep.subr.mxu0 0.0
    %159 = vmatpush1.xpose.msra.mxu0 0.0
    %160 = vmatprep.subr.mxu0 0.0
    %161 = vmatpush1.xpose.msra.mxu0 0.0
    %162 = vmatprep.subr.mxu0 0.0
    %163 = vmatpush1.xpose.msra.mxu0 0.0
    %164 = vmatprep.subr.mxu0 0.0
    %165 = vmatpush1.xpose.msra.mxu0 0.0
    %166 = vmatprep.subr.mxu0 0.0
    %167 = vmatpush1.xpose.msra.mxu0 0.0
    %168 = vmatprep.subr.mxu0 0.0
    %169 = vmatpush1.xpose.msra.mxu0 0.0
    %170 = vmatprep.subr.mxu0 0.0
    %171 = vmatpush1.xpose.msra.mxu0 0.0
    %172 = vmatprep.subr.mxu0 0.0
    %173 = vmatpush1.xpose.msra.mxu0 0.0
    %174 = vmatprep.subr.mxu0 0.0
    %175 = vmatpush1.xpose.msra.mxu0 0.0
    %176 = vmatprep.subr.mxu0 0.0
    %177 = vmatpush1.xpose.msra.mxu0 0.0
    %178 = vmatprep.subr.mxu0 0.0
    %179 = vmatpush1.xpose.msra.mxu0 0.0
    %180 = vmatprep.subr.mxu0 0.0
    %181 = vmatpush1.xpose.msra.mxu0 0.0
    %182 = vmatprep.subr.mxu0 0.0
    %183 = vmatpush1.xpose.msra.mxu0 0.0
    %184 = vmatprep.subr.mxu0 0.0
    %185 = vmatpush1.xpose.msra.mxu0 0.0
    %186 = vmatprep.subr.mxu0 0.0
    %187 = vmatpush1.xpose.msra.mxu0 0.0
    %188 = vmatprep.subr.mxu0 0.0
    %189 = vmatpush1.xpose.msra.mxu0 %v156
    %190 = vmatprep.subr.mxu0 0.0
    %191 = vmatpush2.xpose.msra.mxu0 0.0
    %192 = vmatprep.subr.mxu0 0.0
    %193 = vmatpush2.xpose.msra.mxu0 0.0
    %194 = vmatprep.subr.mxu0 0.0
    %195 = vmatpush2.xpose.msra.mxu0 0.0
    %196 = vmatprep.subr.mxu0 0.0
    %197 = vmatpush2.xpose.msra.mxu0 0.0
    %198 = vmatprep.subr.mxu0 0.0
    %199 = vmatpush2.xpose.msra.mxu0 0.0
    %200 = vmatprep.subr.mxu0 0.0
    %201 = vmatpush2.xpose.msra.mxu0 0.0
    %202 = vmatprep.subr.mxu0 0.0
    %203 = vmatpush2.xpose.msra.mxu0 0.0
    %204 = vmatprep.subr.mxu0 0.0
    %205 = vmatpush2.xpose.msra.mxu0 0.0
    %206 = vmatprep.subr.mxu0 0.0
    %207 = vmatpush2.xpose.msra.mxu0 0.0
    %208 = vmatprep.subr.mxu0 0.0
    %209 = vmatpush2.xpose.msra.mxu0 0.0
    %210 = vmatprep.subr.mxu0 0.0
    %211 = vmatpush2.xpose.msra.mxu0 0.0
    %212 = vmatprep.subr.mxu0 0.0
    %213 = vmatpush2.xpose.msra.mxu0 0.0
    %214 = vmatprep.subr.mxu0 0.0
    %215 = vmatpush2.xpose.msra.mxu0 0.0
    %216 = vmatprep.subr.mxu0 0.0
    %217 = vmatpush2.xpose.msra.mxu0 0.0
    %218 = vmatprep.subr.mxu0 0.0
    %219 = vmatpush2.xpose.msra.mxu0 0.0
    %220 = vmatprep.subr.mxu0 0.0
    %221 = vmatpush2.xpose.msra.mxu0 0.0
    %222 = vmatprep.mubr.f32.mxu0 0.0
    %223 = vmatmul.mubr.f32.gmra.mxu0 %v154
    %v224 = vpop.f32.mrf.mxu0
    %v225 = vadd.f32 0.0, %v224
    %v226 = vpop.f32.mrf.mxu0
    %227 = vdwg.mxu0
    %v228 = vmul.f32 %v225, 0.35355338
    %v229 = vsel %vm153, %v228, -inf
    %230 = vmax.xlane.f32.xlu0 %v229
    %v231 = vpop.xlane.xlu0 %230
    %v232 = vsub.f32 %v228, %v231
    %v233 = vmul.f32 %v232, 1.442695
    %v234 = vpow.pop %v233
    %v235 = vsel %vm153, %v234, 0.0
    %236 = vadd.xlane.f32.xlu0 %v235
    %v237 = vpop.xlane.xlu0 %236
    %238 = vrot.lane.b32.xlu0 %v142, 64
    %v239 = vpop.permute.xlu0 %238
    %v242 = vsel %vm153, %v234, 0
    %244 = vmatprep.subr.mxu0 0.0
    %245 = vmatpush1.msra.mxu0 0.0
    %246 = vmatprep.subr.mxu0 0.0
    %247 = vmatpush1.msra.mxu0 0.0
    %248 = vmatprep.subr.mxu0 0.0
    %249 = vmatpush1.msra.mxu0 0.0
    %250 = vmatprep.subr.mxu0 0.0
    %251 = vmatpush1.msra.mxu0 0.0
    %252 = vmatprep.subr.mxu0 0.0
    %253 = vmatpush1.msra.mxu0 0.0
    %254 = vmatprep.subr.mxu0 0.0
    %255 = vmatpush1.msra.mxu0 0.0
    %256 = vmatprep.subr.mxu0 0.0
    %257 = vmatpush1.msra.mxu0 0.0
    %258 = vmatprep.subr.mxu0 0.0
    %259 = vmatpush1.msra.mxu0 0.0
    %260 = vmatprep.subr.mxu0 0.0
    %261 = vmatpush1.msra.mxu0 0.0
    %262 = vmatprep.subr.mxu0 0.0
    %263 = vmatpush1.msra.mxu0 0.0
    %264 = vmatprep.subr.mxu0 0.0
    %265 = vmatpush1.msra.mxu0 0.0
    %266 = vmatprep.subr.mxu0 0.0
    %267 = vmatpush1.msra.mxu0 0.0
    %268 = vmatprep.subr.mxu0 0.0
    %269 = vmatpush1.msra.mxu0 0.0
    %270 = vmatprep.subr.mxu0 0.0
    %271 = vmatpush1.msra.mxu0 0.0
    %272 = vmatprep.subr.mxu0 0.0
    %273 = vmatpush1.msra.mxu0 0.0
    %274 = vmatprep.subr.mxu0 0.0
    %275 = vmatpush1.msra.mxu0 %v239
    %276 = vmatprep.subr.mxu0 0.0
    %277 = vmatpush2.msra.mxu0 0.0
    %278 = vmatprep.subr.mxu0 0.0
    %279 = vmatpush2.msra.mxu0 0.0
    %280 = vmatprep.subr.mxu0 0.0
    %281 = vmatpush2.msra.mxu0 0.0
    %282 = vmatprep.subr.mxu0 0.0
    %283 = vmatpush2.msra.mxu0 0.0
    %284 = vmatprep.subr.mxu0 0.0
    %285 = vmatpush2.msra.mxu0 0.0
    %286 = vmatprep.subr.mxu0 0.0
    %287 = vmatpush2.msra.mxu0 0.0
    %288 = vmatprep.subr.mxu0 0.0
    %289 = vmatpush2.msra.mxu0 0.0
    %290 = vmatprep.subr.mxu0 0.0
    %291 = vmatpush2.msra.mxu0 0.0
    %292 = vmatprep.subr.mxu0 0.0
    %293 = vmatpush2.msra.mxu0 0.0
    %294 = vmatprep.subr.mxu0 0.0
    %295 = vmatpush2.msra.mxu0 0.0
    %296 = vmatprep.subr.mxu0 0.0
    %297 = vmatpush2.msra.mxu0 0.0
    %298 = vmatprep.subr.mxu0 0.0
    %299 = vmatpush2.msra.mxu0 0.0
    %300 = vmatprep.subr.mxu0 0.0
    %301 = vmatpush2.msra.mxu0 0.0
    %302 = vmatprep.subr.mxu0 0.0
    %303 = vmatpush2.msra.mxu0 0.0
    %304 = vmatprep.subr.mxu0 0.0
    %305 = vmatpush2.msra.mxu0 0.0
    %306 = vmatprep.subr.mxu0 0.0
    %307 = vmatpush2.msra.mxu0 0.0
    %308 = vmatprep.mubr.f32.mxu0 0.0
    %309 = vmatmul.mubr.f32.gmra.mxu0 %v242
    %v310 = vpop.f32.mrf.mxu0
    %v311 = vadd.f32 0.0, %v310
    %v312 = vpop.f32.mrf.mxu0
    %313 = vdwg.mxu0
    %v314 = vrcp.pop %v237
    %v315 = vmul.f32 %v311, %v314
    %316 = vrot.lane.b32.xlu0 %v142, 120
    %v317 = vpop.permute.xlu0 %316
    %318 = vrot.lane.b32.xlu0 %v142, 88
    %v319 = vpop.permute.xlu0 %318
    %v320 = vsel %vm153, %v317, 0
    %v322 = vsel %vm153, %v319, 0
    %324 = vmatprep.subr.mxu0 0.0
    %325 = vmatpush1.xpose.msra.mxu0 0.0
    %326 = vmatprep.subr.mxu0 0.0
    %327 = vmatpush1.xpose.msra.mxu0 0.0
    %328 = vmatprep.subr.mxu0 0.0
    %329 = vmatpush1.xpose.msra.mxu0 0.0
    %330 = vmatprep.subr.mxu0 0.0
    %331 = vmatpush1.xpose.msra.mxu0 0.0
    %332 = vmatprep.subr.mxu0 0.0
    %333 = vmatpush1.xpose.msra.mxu0 0.0
    %334 = vmatprep.subr.mxu0 0.0
    %335 = vmatpush1.xpose.msra.mxu0 0.0
    %336 = vmatprep.subr.mxu0 0.0
    %337 = vmatpush1.xpose.msra.mxu0 0.0
    %338 = vmatprep.subr.mxu0 0.0
    %339 = vmatpush1.xpose.msra.mxu0 0.0
    %340 = vmatprep.subr.mxu0 0.0
    %341 = vmatpush1.xpose.msra.mxu0 0.0
    %342 = vmatprep.subr.mxu0 0.0
    %343 = vmatpush1.xpose.msra.mxu0 0.0
    %344 = vmatprep.subr.mxu0 0.0
    %345 = vmatpush1.xpose.msra.mxu0 0.0
    %346 = vmatprep.subr.mxu0 0.0
    %347 = vmatpush1.xpose.msra.mxu0 0.0
    %348 = vmatprep.subr.mxu0 0.0
    %349 = vmatpush1.xpose.msra.mxu0 0.0
    %350 = vmatprep.subr.mxu0 0.0
    %351 = vmatpush1.xpose.msra.mxu0 0.0
    %352 = vmatprep.subr.mxu0 0.0
    %353 = vmatpush1.xpose.msra.mxu0 0.0
    %354 = vmatprep.subr.mxu0 0.0
    %355 = vmatpush1.xpose.msra.mxu0 %v322
    %356 = vmatprep.subr.mxu0 0.0
    %357 = vmatpush2.xpose.msra.mxu0 0.0
    %358 = vmatprep.subr.mxu0 0.0
    %359 = vmatpush2.xpose.msra.mxu0 0.0
    %360 = vmatprep.subr.mxu0 0.0
    %361 = vmatpush2.xpose.msra.mxu0 0.0
    %362 = vmatprep.subr.mxu0 0.0
    %363 = vmatpush2.xpose.msra.mxu0 0.0
    %364 = vmatprep.subr.mxu0 0.0
    %365 = vmatpush2.xpose.msra.mxu0 0.0
    %366 = vmatprep.subr.mxu0 0.0
    %367 = vmatpush2.xpose.msra.mxu0 0.0
    %368 = vmatprep.subr.mxu0 0.0
    %369 = vmatpush2.xpose.msra.mxu0 0.0
    %370 = vmatprep.subr.mxu0 0.0
    %371 = vmatpush2.xpose.msra.mxu0 0.0
    %372 = vmatprep.subr.mxu0 0.0
    %373 = vmatpush2.xpose.msra.mxu0 0.0
    %374 = vmatprep.subr.mxu0 0.0
    %375 = vmatpush2.xpose.msra.mxu0 0.0
    %376 = vmatprep.subr.mxu0 0.0
    %377 = vmatpush2.xpose.msra.mxu0 0.0
    %378 = vmatprep.subr.mxu0 0.0
    %379 = vmatpush2.xpose.msra.mxu0 0.0
    %380 = vmatprep.subr.mxu0 0.0
    %381 = vmatpush2.xpose.msra.mxu0 0.0
    %382 = vmatprep.subr.mxu0 0.0
    %383 = vmatpush2.xpose.msra.mxu0 0.0
    %384 = vmatprep.subr.mxu0 0.0
    %385 = vmatpush2.xpose.msra.mxu0 0.0
    %386 = vmatprep.subr.mxu0 0.0
    %387 = vmatpush2.xpose.msra.mxu0 0.0
    %388 = vmatprep.mubr.f32.mxu0 0.0
    %389 = vmatmul.mubr.f32.gmra.mxu0 %v320
    %v390 = vpop.f32.mrf.mxu0
    %v391 = vadd.f32 0.0, %v390
    %v392 = vpop.f32.mrf.mxu0
    %393 = vdwg.mxu0
    %v394 = vmul.f32 %v391, 0.35355338
    %v395 = vsel %vm153, %v394, -inf
    %396 = vmax.xlane.f32.xlu0 %v395
    %v397 = vpop.xlane.xlu0 %396
    %v398 = vsub.f32 %v394, %v397
    %v399 = vmul.f32 %v398, 1.442695
    %v400 = vpow.pop %v399
    %v401 = vsel %vm153, %v400, 0.0
    %402 = vadd.xlane.f32.xlu0 %v401
    %v403 = vpop.xlane.xlu0 %402
    %404 = vrot.lane.b32.xlu0 %v142, 56
    %v405 = vpop.permute.xlu0 %404
    %v408 = vsel %vm153, %v400, 0
    %410 = vmatprep.subr.mxu0 0.0
    %411 = vmatpush1.msra.mxu0 0.0
    %412 = vmatprep.subr.mxu0 0.0
    %413 = vmatpush1.msra.mxu0 0.0
    %414 = vmatprep.subr.mxu0 0.0
    %415 = vmatpush1.msra.mxu0 0.0
    %416 = vmatprep.subr.mxu0 0.0
    %417 = vmatpush1.msra.mxu0 0.0
    %418 = vmatprep.subr.mxu0 0.0
    %419 = vmatpush1.msra.mxu0 0.0
    %420 = vmatprep.subr.mxu0 0.0
    %421 = vmatpush1.msra.mxu0 0.0
    %422 = vmatprep.subr.mxu0 0.0
    %423 = vmatpush1.msra.mxu0 0.0
    %424 = vmatprep.subr.mxu0 0.0
    %425 = vmatpush1.msra.mxu0 0.0
    %426 = vmatprep.subr.mxu0 0.0
    %427 = vmatpush1.msra.mxu0 0.0
    %428 = vmatprep.subr.mxu0 0.0
    %429 = vmatpush1.msra.mxu0 0.0
    %430 = vmatprep.subr.mxu0 0.0
    %431 = vmatpush1.msra.mxu0 0.0
    %432 = vmatprep.subr.mxu0 0.0
    %433 = vmatpush1.msra.mxu0 0.0
    %434 = vmatprep.subr.mxu0 0.0
    %435 = vmatpush1.msra.mxu0 0.0
    %436 = vmatprep.subr.mxu0 0.0
    %437 = vmatpush1.msra.mxu0 0.0
    %438 = vmatprep.subr.mxu0 0.0
    %439 = vmatpush1.msra.mxu0 0.0
    %440 = vmatprep.subr.mxu0 0.0
    %441 = vmatpush1.msra.mxu0 %v405
    %442 = vmatprep.subr.mxu0 0.0
    %443 = vmatpush2.msra.mxu0 0.0
    %444 = vmatprep.subr.mxu0 0.0
    %445 = vmatpush2.msra.mxu0 0.0
    %446 = vmatprep.subr.mxu0 0.0
    %447 = vmatpush2.msra.mxu0 0.0
    %448 = vmatprep.subr.mxu0 0.0
    %449 = vmatpush2.msra.mxu0 0.0
    %450 = vmatprep.subr.mxu0 0.0
    %451 = vmatpush2.msra.mxu0 0.0
    %452 = vmatprep.subr.mxu0 0.0
    %453 = vmatpush2.msra.mxu0 0.0
    %454 = vmatprep.subr.mxu0 0.0
    %455 = vmatpush2.msra.mxu0 0.0
    %456 = vmatprep.subr.mxu0 0.0
    %457 = vmatpush2.msra.mxu0 0.0
    %458 = vmatprep.subr.mxu0 0.0
    %459 = vmatpush2.msra.mxu0 0.0
    %460 = vmatprep.subr.mxu0 0.0
    %461 = vmatpush2.msra.mxu0 0.0
    %462 = vmatprep.subr.mxu0 0.0
    %463 = vmatpush2.msra.mxu0 0.0
    %464 = vmatprep.subr.mxu0 0.0
    %465 = vmatpush2.msra.mxu0 0.0
    %466 = vmatprep.subr.mxu0 0.0
    %467 = vmatpush2.msra.mxu0 0.0
    %468 = vmatprep.subr.mxu0 0.0
    %469 = vmatpush2.msra.mxu0 0.0
    %470 = vmatprep.subr.mxu0 0.0
    %471 = vmatpush2.msra.mxu0 0.0
    %472 = vmatprep.subr.mxu0 0.0
    %473 = vmatpush2.msra.mxu0 0.0
    %474 = vmatprep.mubr.f32.mxu0 0.0
    %475 = vmatmul.mubr.f32.gmra.mxu0 %v408
    %v476 = vpop.f32.mrf.mxu0
    %v477 = vadd.f32 0.0, %v476
    %v478 = vpop.f32.mrf.mxu0
    %479 = vdwg.mxu0
    %v480 = vrcp.pop %v403
    %v481 = vmul.f32 %v477, %v480
    %482 = vrot.lane.b32.xlu0 %v142, 112
    %v483 = vpop.permute.xlu0 %482
    %484 = vrot.lane.b32.xlu0 %v142, 80
    %v485 = vpop.permute.xlu0 %484
    %v486 = vsel %vm153, %v483, 0
    %v488 = vsel %vm153, %v485, 0
    %490 = vmatprep.subr.mxu0 0.0
    %491 = vmatpush1.xpose.msra.mxu0 0.0
    %492 = vmatprep.subr.mxu0 0.0
    %493 = vmatpush1.xpose.msra.mxu0 0.0
    %494 = vmatprep.subr.mxu0 0.0
    %495 = vmatpush1.xpose.msra.mxu0 0.0
    %496 = vmatprep.subr.mxu0 0.0
    %497 = vmatpush1.xpose.msra.mxu0 0.0
    %498 = vmatprep.subr.mxu0 0.0
    %499 = vmatpush1.xpose.msra.mxu0 0.0
    %500 = vmatprep.subr.mxu0 0.0
    %501 = vmatpush1.xpose.msra.mxu0 0.0
    %502 = vmatprep.subr.mxu0 0.0
    %503 = vmatpush1.xpose.msra.mxu0 0.0
    %504 = vmatprep.subr.mxu0 0.0
    %505 = vmatpush1.xpose.msra.mxu0 0.0
    %506 = vmatprep.subr.mxu0 0.0
    %507 = vmatpush1.xpose.msra.mxu0 0.0
    %508 = vmatprep.subr.mxu0 0.0
    %509 = vmatpush1.xpose.msra.mxu0 0.0
    %510 = vmatprep.subr.mxu0 0.0
    %511 = vmatpush1.xpose.msra.mxu0 0.0
    %512 = vmatprep.subr.mxu0 0.0
    %513 = vmatpush1.xpose.msra.mxu0 0.0
    %514 = vmatprep.subr.mxu0 0.0
    %515 = vmatpush1.xpose.msra.mxu0 0.0
    %516 = vmatprep.subr.mxu0 0.0
    %517 = vmatpush1.xpose.msra.mxu0 0.0
    %518 = vmatprep.subr.mxu0 0.0
    %519 = vmatpush1.xpose.msra.mxu0 0.0
    %520 = vmatprep.subr.mxu0 0.0
    %521 = vmatpush1.xpose.msra.mxu0 %v488
    %522 = vmatprep.subr.mxu0 0.0
    %523 = vmatpush2.xpose.msra.mxu0 0.0
    %524 = vmatprep.subr.mxu0 0.0
    %525 = vmatpush2.xpose.msra.mxu0 0.0
    %526 = vmatprep.subr.mxu0 0.0
    %527 = vmatpush2.xpose.msra.mxu0 0.0
    %528 = vmatprep.subr.mxu0 0.0
    %529 = vmatpush2.xpose.msra.mxu0 0.0
    %530 = vmatprep.subr.mxu0 0.0
    %531 = vmatpush2.xpose.msra.mxu0 0.0
    %532 = vmatprep.subr.mxu0 0.0
    %533 = vmatpush2.xpose.msra.mxu0 0.0
    %534 = vmatprep.subr.mxu0 0.0
    %535 = vmatpush2.xpose.msra.mxu0 0.0
    %536 = vmatprep.subr.mxu0 0.0
    %537 = vmatpush2.xpose.msra.mxu0 0.0
    %538 = vmatprep.subr.mxu0 0.0
    %539 = vmatpush2.xpose.msra.mxu0 0.0
    %540 = vmatprep.subr.mxu0 0.0
    %541 = vmatpush2.xpose.msra.mxu0 0.0
    %542 = vmatprep.subr.mxu0 0.0
    %543 = vmatpush2.xpose.msra.mxu0 0.0
    %544 = vmatprep.subr.mxu0 0.0
    %545 = vmatpush2.xpose.msra.mxu0 0.0
    %546 = vmatprep.subr.mxu0 0.0
    %547 = vmatpush2.xpose.msra.mxu0 0.0
    %548 = vmatprep.subr.mxu0 0.0
    %549 = vmatpush2.xpose.msra.mxu0 0.0
    %550 = vmatprep.subr.mxu0 0.0
    %551 = vmatpush2.xpose.msra.mxu0 0.0
    %552 = vmatprep.subr.mxu0 0.0
    %553 = vmatpush2.xpose.msra.mxu0 0.0
    %554 = vmatprep.mubr.f32.mxu0 0.0
    %555 = vmatmul.mubr.f32.gmra.mxu0 %v486
    %v556 = vpop.f32.mrf.mxu0
    %v557 = vadd.f32 0.0, %v556
    %v558 = vpop.f32.mrf.mxu0
    %559 = vdwg.mxu0
    %v560 = vmul.f32 %v557, 0.35355338
    %v561 = vsel %vm153, %v560, -inf
    %562 = vmax.xlane.f32.xlu0 %v561
    %v563 = vpop.xlane.xlu0 %562
    %v564 = vsub.f32 %v560, %v563
    %v565 = vmul.f32 %v564, 1.442695
    %v566 = vpow.pop %v565
    %v567 = vsel %vm153, %v566, 0.0
    %568 = vadd.xlane.f32.xlu0 %v567
    %v569 = vpop.xlane.xlu0 %568
    %570 = vrot.lane.b32.xlu0 %v142, 48
    %v571 = vpop.permute.xlu0 %570
    %v574 = vsel %vm153, %v566, 0
    %576 = vmatprep.subr.mxu0 0.0
    %577 = vmatpush1.msra.mxu0 0.0
    %578 = vmatprep.subr.mxu0 0.0
    %579 = vmatpush1.msra.mxu0 0.0
    %580 = vmatprep.subr.mxu0 0.0
    %581 = vmatpush1.msra.mxu0 0.0
    %582 = vmatprep.subr.mxu0 0.0
    %583 = vmatpush1.msra.mxu0 0.0
    %584 = vmatprep.subr.mxu0 0.0
    %585 = vmatpush1.msra.mxu0 0.0
    %586 = vmatprep.subr.mxu0 0.0
    %587 = vmatpush1.msra.mxu0 0.0
    %588 = vmatprep.subr.mxu0 0.0
    %589 = vmatpush1.msra.mxu0 0.0
    %590 = vmatprep.subr.mxu0 0.0
    %591 = vmatpush1.msra.mxu0 0.0
    %592 = vmatprep.subr.mxu0 0.0
    %593 = vmatpush1.msra.mxu0 0.0
    %594 = vmatprep.subr.mxu0 0.0
    %595 = vmatpush1.msra.mxu0 0.0
    %596 = vmatprep.subr.mxu0 0.0
    %597 = vmatpush1.msra.mxu0 0.0
    %598 = vmatprep.subr.mxu0 0.0
    %599 = vmatpush1.msra.mxu0 0.0
    %600 = vmatprep.subr.mxu0 0.0
    %601 = vmatpush1.msra.mxu0 0.0
    %602 = vmatprep.subr.mxu0 0.0
    %603 = vmatpush1.msra.mxu0 0.0
    %604 = vmatprep.subr.mxu0 0.0
    %605 = vmatpush1.msra.mxu0 0.0
    %606 = vmatprep.subr.mxu0 0.0
    %607 = vmatpush1.msra.mxu0 %v571
    %608 = vmatprep.subr.mxu0 0.0
    %609 = vmatpush2.msra.mxu0 0.0
    %610 = vmatprep.subr.mxu0 0.0
    %611 = vmatpush2.msra.mxu0 0.0
    %612 = vmatprep.subr.mxu0 0.0
    %613 = vmatpush2.msra.mxu0 0.0
    %614 = vmatprep.subr.mxu0 0.0
    %615 = vmatpush2.msra.mxu0 0.0
    %616 = vmatprep.subr.mxu0 0.0
    %617 = vmatpush2.msra.mxu0 0.0
    %618 = vmatprep.subr.mxu0 0.0
    %619 = vmatpush2.msra.mxu0 0.0
    %620 = vmatprep.subr.mxu0 0.0
    %621 = vmatpush2.msra.mxu0 0.0
    %622 = vmatprep.subr.mxu0 0.0
    %623 = vmatpush2.msra.mxu0 0.0
    %624 = vmatprep.subr.mxu0 0.0
    %625 = vmatpush2.msra.mxu0 0.0
    %626 = vmatprep.subr.mxu0 0.0
    %627 = vmatpush2.msra.mxu0 0.0
    %628 = vmatprep.subr.mxu0 0.0
    %629 = vmatpush2.msra.mxu0 0.0
    %630 = vmatprep.subr.mxu0 0.0
    %631 = vmatpush2.msra.mxu0 0.0
    %632 = vmatprep.subr.mxu0 0.0
    %633 = vmatpush2.msra.mxu0 0.0
    %634 = vmatprep.subr.mxu0 0.0
    %635 = vmatpush2.msra.mxu0 0.0
    %636 = vmatprep.subr.mxu0 0.0
    %637 = vmatpush2.msra.mxu0 0.0
    %638 = vmatprep.subr.mxu0 0.0
    %639 = vmatpush2.msra.mxu0 0.0
    %640 = vmatprep.mubr.f32.mxu0 0.0
    %641 = vmatmul.mubr.f32.gmra.mxu0 %v574
    %v642 = vpop.f32.mrf.mxu0
    %v643 = vadd.f32 0.0, %v642
    %v644 = vpop.f32.mrf.mxu0
    %645 = vdwg.mxu0
    %v646 = vrcp.pop %v569
    %v647 = vmul.f32 %v643, %v646
    %648 = vrot.lane.b32.xlu0 %v142, 104
    %v649 = vpop.permute.xlu0 %648
    %650 = vrot.lane.b32.xlu0 %v142, 72
    %v651 = vpop.permute.xlu0 %650
    %v652 = vsel %vm153, %v649, 0
    %v654 = vsel %vm153, %v651, 0
    %656 = vmatprep.subr.mxu0 0.0
    %657 = vmatpush1.xpose.msra.mxu0 0.0
    %658 = vmatprep.subr.mxu0 0.0
    %659 = vmatpush1.xpose.msra.mxu0 0.0
    %660 = vmatprep.subr.mxu0 0.0
    %661 = vmatpush1.xpose.msra.mxu0 0.0
    %662 = vmatprep.subr.mxu0 0.0
    %663 = vmatpush1.xpose.msra.mxu0 0.0
    %664 = vmatprep.subr.mxu0 0.0
    %665 = vmatpush1.xpose.msra.mxu0 0.0
    %666 = vmatprep.subr.mxu0 0.0
    %667 = vmatpush1.xpose.msra.mxu0 0.0
    %668 = vmatprep.subr.mxu0 0.0
    %669 = vmatpush1.xpose.msra.mxu0 0.0
    %670 = vmatprep.subr.mxu0 0.0
    %671 = vmatpush1.xpose.msra.mxu0 0.0
    %672 = vmatprep.subr.mxu0 0.0
    %673 = vmatpush1.xpose.msra.mxu0 0.0
    %674 = vmatprep.subr.mxu0 0.0
    %675 = vmatpush1.xpose.msra.mxu0 0.0
    %676 = vmatprep.subr.mxu0 0.0
    %677 = vmatpush1.xpose.msra.mxu0 0.0
    %678 = vmatprep.subr.mxu0 0.0
    %679 = vmatpush1.xpose.msra.mxu0 0.0
    %680 = vmatprep.subr.mxu0 0.0
    %681 = vmatpush1.xpose.msra.mxu0 0.0
    %682 = vmatprep.subr.mxu0 0.0
    %683 = vmatpush1.xpose.msra.mxu0 0.0
    %684 = vmatprep.subr.mxu0 0.0
    %685 = vmatpush1.xpose.msra.mxu0 0.0
    %686 = vmatprep.subr.mxu0 0.0
    %687 = vmatpush1.xpose.msra.mxu0 %v654
    %688 = vmatprep.subr.mxu0 0.0
    %689 = vmatpush2.xpose.msra.mxu0 0.0
    %690 = vmatprep.subr.mxu0 0.0
    %691 = vmatpush2.xpose.msra.mxu0 0.0
    %692 = vmatprep.subr.mxu0 0.0
    %693 = vmatpush2.xpose.msra.mxu0 0.0
    %694 = vmatprep.subr.mxu0 0.0
    %695 = vmatpush2.xpose.msra.mxu0 0.0
    %696 = vmatprep.subr.mxu0 0.0
    %697 = vmatpush2.xpose.msra.mxu0 0.0
    %698 = vmatprep.subr.mxu0 0.0
    %699 = vmatpush2.xpose.msra.mxu0 0.0
    %700 = vmatprep.subr.mxu0 0.0
    %701 = vmatpush2.xpose.msra.mxu0 0.0
    %702 = vmatprep.subr.mxu0 0.0
    %703 = vmatpush2.xpose.msra.mxu0 0.0
    %704 = vmatprep.subr.mxu0 0.0
    %705 = vmatpush2.xpose.msra.mxu0 0.0
    %706 = vmatprep.subr.mxu0 0.0
    %707 = vmatpush2.xpose.msra.mxu0 0.0
    %708 = vmatprep.subr.mxu0 0.0
    %709 = vmatpush2.xpose.msra.mxu0 0.0
    %710 = vmatprep.subr.mxu0 0.0
    %711 = vmatpush2.xpose.msra.mxu0 0.0
    %712 = vmatprep.subr.mxu0 0.0
    %713 = vmatpush2.xpose.msra.mxu0 0.0
    %714 = vmatprep.subr.mxu0 0.0
    %715 = vmatpush2.xpose.msra.mxu0 0.0
    %716 = vmatprep.subr.mxu0 0.0
    %717 = vmatpush2.xpose.msra.mxu0 0.0
    %718 = vmatprep.subr.mxu0 0.0
    %719 = vmatpush2.xpose.msra.mxu0 0.0
    %720 = vmatprep.mubr.f32.mxu0 0.0
    %721 = vmatmul.mubr.f32.gmra.mxu0 %v652
    %v722 = vpop.f32.mrf.mxu0
    %v723 = vadd.f32 0.0, %v722
    %v724 = vpop.f32.mrf.mxu0
    %725 = vdwg.mxu0
    %v726 = vmul.f32 %v723, 0.35355338
    %v727 = vsel %vm153, %v726, -inf
    %728 = vmax.xlane.f32.xlu0 %v727
    %v729 = vpop.xlane.xlu0 %728
    %v730 = vsub.f32 %v726, %v729
    %v731 = vmul.f32 %v730, 1.442695
    %v732 = vpow.pop %v731
    %v733 = vsel %vm153, %v732, 0.0
    %734 = vadd.xlane.f32.xlu0 %v733
    %v735 = vpop.xlane.xlu0 %734
    %736 = vrot.lane.b32.xlu0 %v142, 40
    %v737 = vpop.permute.xlu0 %736
    %v740 = vsel %vm153, %v732, 0
    %742 = vmatprep.subr.mxu0 0.0
    %743 = vmatpush1.msra.mxu0 0.0
    %744 = vmatprep.subr.mxu0 0.0
    %745 = vmatpush1.msra.mxu0 0.0
    %746 = vmatprep.subr.mxu0 0.0
    %747 = vmatpush1.msra.mxu0 0.0
    %748 = vmatprep.subr.mxu0 0.0
    %749 = vmatpush1.msra.mxu0 0.0
    %750 = vmatprep.subr.mxu0 0.0
    %751 = vmatpush1.msra.mxu0 0.0
    %752 = vmatprep.subr.mxu0 0.0
    %753 = vmatpush1.msra.mxu0 0.0
    %754 = vmatprep.subr.mxu0 0.0
    %755 = vmatpush1.msra.mxu0 0.0
    %756 = vmatprep.subr.mxu0 0.0
    %757 = vmatpush1.msra.mxu0 0.0
    %758 = vmatprep.subr.mxu0 0.0
    %759 = vmatpush1.msra.mxu0 0.0
    %760 = vmatprep.subr.mxu0 0.0
    %761 = vmatpush1.msra.mxu0 0.0
    %762 = vmatprep.subr.mxu0 0.0
    %763 = vmatpush1.msra.mxu0 0.0
    %764 = vmatprep.subr.mxu0 0.0
    %765 = vmatpush1.msra.mxu0 0.0
    %766 = vmatprep.subr.mxu0 0.0
    %767 = vmatpush1.msra.mxu0 0.0
    %768 = vmatprep.subr.mxu0 0.0
    %769 = vmatpush1.msra.mxu0 0.0
    %770 = vmatprep.subr.mxu0 0.0
    %771 = vmatpush1.msra.mxu0 0.0
    %772 = vmatprep.subr.mxu0 0.0
    %773 = vmatpush1.msra.mxu0 %v737
    %774 = vmatprep.subr.mxu0 0.0
    %775 = vmatpush2.msra.mxu0 0.0
    %776 = vmatprep.subr.mxu0 0.0
    %777 = vmatpush2.msra.mxu0 0.0
    %778 = vmatprep.subr.mxu0 0.0
    %779 = vmatpush2.msra.mxu0 0.0
    %780 = vmatprep.subr.mxu0 0.0
    %781 = vmatpush2.msra.mxu0 0.0
    %782 = vmatprep.subr.mxu0 0.0
    %783 = vmatpush2.msra.mxu0 0.0
    %784 = vmatprep.subr.mxu0 0.0
    %785 = vmatpush2.msra.mxu0 0.0
    %786 = vmatprep.subr.mxu0 0.0
    %787 = vmatpush2.msra.mxu0 0.0
    %788 = vmatprep.subr.mxu0 0.0
    %789 = vmatpush2.msra.mxu0 0.0
    %790 = vmatprep.subr.mxu0 0.0
    %791 = vmatpush2.msra.mxu0 0.0
    %792 = vmatprep.subr.mxu0 0.0
    %793 = vmatpush2.msra.mxu0 0.0
    %794 = vmatprep.subr.mxu0 0.0
    %795 = vmatpush2.msra.mxu0 0.0
    %796 = vmatprep.subr.mxu0 0.0
    %797 = vmatpush2.msra.mxu0 0.0
    %798 = vmatprep.subr.mxu0 0.0
    %799 = vmatpush2.msra.mxu0 0.0
    %800 = vmatprep.subr.mxu0 0.0
    %801 = vmatpush2.msra.mxu0 0.0
    %802 = vmatprep.subr.mxu0 0.0
    %803 = vmatpush2.msra.mxu0 0.0
    %804 = vmatprep.subr.mxu0 0.0
    %805 = vmatpush2.msra.mxu0 0.0
    %806 = vmatprep.mubr.f32.mxu0 0.0
    %807 = vmatmul.mubr.f32.gmra.mxu0 %v740
    %v808 = vpop.f32.mrf.mxu0
    %v809 = vadd.f32 0.0, %v808
    %v810 = vpop.f32.mrf.mxu0
    %811 = vdwg.mxu0
    %v812 = vrcp.pop %v735
    %v813 = vmul.f32 %v809, %v812
    %815 = vrot.lane.b32.xlu0 %v481, 8
    %v816 = vpop.permute.xlu0 %815
    %819 = vrot.lane.b32.xlu0 %v647, 16
    %v820 = vpop.permute.xlu0 %819
    %823 = vrot.lane.b32.xlu0 %v813, 24
    %v824 = vpop.permute.xlu0 %823
    %v826 = vsel %vm153, %v315, %v816
    %vm827 = vcmask 130048
    %v828 = vsel %vm827, %v826, %v820
    %vm829 = vcmask 195584
    %v830 = vsel %vm829, %v828, %v824
    %832 = vrot.lane.b32.xlu0 %v147, 96
    %v833 = vpop.permute.xlu0 %832
    %v834 = vsel %vm153, %v147, 0
    %v836 = vsel %vm153, %v833, 0
    %838 = vmatprep.subr.mxu0 0.0
    %839 = vmatpush1.xpose.msra.mxu0 0.0
    %840 = vmatprep.subr.mxu0 0.0
    %841 = vmatpush1.xpose.msra.mxu0 0.0
    %842 = vmatprep.subr.mxu0 0.0
    %843 = vmatpush1.xpose.msra.mxu0 0.0
    %844 = vmatprep.subr.mxu0 0.0
    %845 = vmatpush1.xpose.msra.mxu0 0.0
    %846 = vmatprep.subr.mxu0 0.0
    %847 = vmatpush1.xpose.msra.mxu0 0.0
    %848 = vmatprep.subr.mxu0 0.0
    %849 = vmatpush1.xpose.msra.mxu0 0.0
    %850 = vmatprep.subr.mxu0 0.0
    %851 = vmatpush1.xpose.msra.mxu0 0.0
    %852 = vmatprep.subr.mxu0 0.0
    %853 = vmatpush1.xpose.msra.mxu0 0.0
    %854 = vmatprep.subr.mxu0 0.0
    %855 = vmatpush1.xpose.msra.mxu0 0.0
    %856 = vmatprep.subr.mxu0 0.0
    %857 = vmatpush1.xpose.msra.mxu0 0.0
    %858 = vmatprep.subr.mxu0 0.0
    %859 = vmatpush1.xpose.msra.mxu0 0.0
    %860 = vmatprep.subr.mxu0 0.0
    %861 = vmatpush1.xpose.msra.mxu0 0.0
    %862 = vmatprep.subr.mxu0 0.0
    %863 = vmatpush1.xpose.msra.mxu0 0.0
    %864 = vmatprep.subr.mxu0 0.0
    %865 = vmatpush1.xpose.msra.mxu0 0.0
    %866 = vmatprep.subr.mxu0 0.0
    %867 = vmatpush1.xpose.msra.mxu0 0.0
    %868 = vmatprep.subr.mxu0 0.0
    %869 = vmatpush1.xpose.msra.mxu0 %v836
    %870 = vmatprep.subr.mxu0 0.0
    %871 = vmatpush2.xpose.msra.mxu0 0.0
    %872 = vmatprep.subr.mxu0 0.0
    %873 = vmatpush2.xpose.msra.mxu0 0.0
    %874 = vmatprep.subr.mxu0 0.0
    %875 = vmatpush2.xpose.msra.mxu0 0.0
    %876 = vmatprep.subr.mxu0 0.0
    %877 = vmatpush2.xpose.msra.mxu0 0.0
    %878 = vmatprep.subr.mxu0 0.0
    %879 = vmatpush2.xpose.msra.mxu0 0.0
    %880 = vmatprep.subr.mxu0 0.0
    %881 = vmatpush2.xpose.msra.mxu0 0.0
    %882 = vmatprep.subr.mxu0 0.0
    %883 = vmatpush2.xpose.msra.mxu0 0.0
    %884 = vmatprep.subr.mxu0 0.0
    %885 = vmatpush2.xpose.msra.mxu0 0.0
    %886 = vmatprep.subr.mxu0 0.0
    %887 = vmatpush2.xpose.msra.mxu0 0.0
    %888 = vmatprep.subr.mxu0 0.0
    %889 = vmatpush2.xpose.msra.mxu0 0.0
    %890 = vmatprep.subr.mxu0 0.0
    %891 = vmatpush2.xpose.msra.mxu0 0.0
    %892 = vmatprep.subr.mxu0 0.0
    %893 = vmatpush2.xpose.msra.mxu0 0.0
    %894 = vmatprep.subr.mxu0 0.0
    %895 = vmatpush2.xpose.msra.mxu0 0.0
    %896 = vmatprep.subr.mxu0 0.0
    %897 = vmatpush2.xpose.msra.mxu0 0.0
    %898 = vmatprep.subr.mxu0 0.0
    %899 = vmatpush2.xpose.msra.mxu0 0.0
    %900 = vmatprep.subr.mxu0 0.0
    %901 = vmatpush2.xpose.msra.mxu0 0.0
    %902 = vmatprep.mubr.f32.mxu0 0.0
    %903 = vmatmul.mubr.f32.gmra.mxu0 %v834
    %v904 = vpop.f32.mrf.mxu0
    %v905 = vadd.f32 0.0, %v904
    %v906 = vpop.f32.mrf.mxu0
    %907 = vdwg.mxu0
    %v908 = vmul.f32 %v905, 0.35355338
    %v909 = vsel %vm153, %v908, -inf
    %910 = vmax.xlane.f32.xlu0 %v909
    %v911 = vpop.xlane.xlu0 %910
    %v912 = vsub.f32 %v908, %v911
    %v913 = vmul.f32 %v912, 1.442695
    %v914 = vpow.pop %v913
    %v915 = vsel %vm153, %v914, 0.0
    %916 = vadd.xlane.f32.xlu0 %v915
    %v917 = vpop.xlane.xlu0 %916
    %918 = vrot.lane.b32.xlu0 %v147, 64
    %v919 = vpop.permute.xlu0 %918
    %v922 = vsel %vm153, %v914, 0
    %924 = vmatprep.subr.mxu0 0.0
    %925 = vmatpush1.msra.mxu0 0.0
    %926 = vmatprep.subr.mxu0 0.0
    %927 = vmatpush1.msra.mxu0 0.0
    %928 = vmatprep.subr.mxu0 0.0
    %929 = vmatpush1.msra.mxu0 0.0
    %930 = vmatprep.subr.mxu0 0.0
    %931 = vmatpush1.msra.mxu0 0.0
    %932 = vmatprep.subr.mxu0 0.0
    %933 = vmatpush1.msra.mxu0 0.0
    %934 = vmatprep.subr.mxu0 0.0
    %935 = vmatpush1.msra.mxu0 0.0
    %936 = vmatprep.subr.mxu0 0.0
    %937 = vmatpush1.msra.mxu0 0.0
    %938 = vmatprep.subr.mxu0 0.0
    %939 = vmatpush1.msra.mxu0 0.0
    %940 = vmatprep.subr.mxu0 0.0
    %941 = vmatpush1.msra.mxu0 0.0
    %942 = vmatprep.subr.mxu0 0.0
    %943 = vmatpush1.msra.mxu0 0.0
    %944 = vmatprep.subr.mxu0 0.0
    %945 = vmatpush1.msra.mxu0 0.0
    %946 = vmatprep.subr.mxu0 0.0
    %947 = vmatpush1.msra.mxu0 0.0
    %948 = vmatprep.subr.mxu0 0.0
    %949 = vmatpush1.msra.mxu0 0.0
    %950 = vmatprep.subr.mxu0 0.0
    %951 = vmatpush1.msra.mxu0 0.0
    %952 = vmatprep.subr.mxu0 0.0
    %953 = vmatpush1.msra.mxu0 0.0
    %954 = vmatprep.subr.mxu0 0.0
    %955 = vmatpush1.msra.mxu0 %v919
    %956 = vmatprep.subr.mxu0 0.0
    %957 = vmatpush2.msra.mxu0 0.0
    %958 = vmatprep.subr.mxu0 0.0
    %959 = vmatpush2.msra.mxu0 0.0
    %960 = vmatprep.subr.mxu0 0.0
    %961 = vmatpush2.msra.mxu0 0.0
    %962 = vmatprep.subr.mxu0 0.0
    %963 = vmatpush2.msra.mxu0 0.0
    %964 = vmatprep.subr.mxu0 0.0
    %965 = vmatpush2.msra.mxu0 0.0
    %966 = vmatprep.subr.mxu0 0.0
    %967 = vmatpush2.msra.mxu0 0.0
    %968 = vmatprep.subr.mxu0 0.0
    %969 = vmatpush2.msra.mxu0 0.0
    %970 = vmatprep.subr.mxu0 0.0
    %971 = vmatpush2.msra.mxu0 0.0
    %972 = vmatprep.subr.mxu0 0.0
    %973 = vmatpush2.msra.mxu0 0.0
    %974 = vmatprep.subr.mxu0 0.0
    %975 = vmatpush2.msra.mxu0 0.0
    %976 = vmatprep.subr.mxu0 0.0
    %977 = vmatpush2.msra.mxu0 0.0
    %978 = vmatprep.subr.mxu0 0.0
    %979 = vmatpush2.msra.mxu0 0.0
    %980 = vmatprep.subr.mxu0 0.0
    %981 = vmatpush2.msra.mxu0 0.0
    %982 = vmatprep.subr.mxu0 0.0
    %983 = vmatpush2.msra.mxu0 0.0
    %984 = vmatprep.subr.mxu0 0.0
    %985 = vmatpush2.msra.mxu0 0.0
    %986 = vmatprep.subr.mxu0 0.0
    %987 = vmatpush2.msra.mxu0 0.0
    %988 = vmatprep.mubr.f32.mxu0 0.0
    %989 = vmatmul.mubr.f32.gmra.mxu0 %v922
    %v990 = vpop.f32.mrf.mxu0
    %v991 = vadd.f32 0.0, %v990
    %v992 = vpop.f32.mrf.mxu0
    %993 = vdwg.mxu0
    %v994 = vrcp.pop %v917
    %v995 = vmul.f32 %v991, %v994
    %996 = vrot.lane.b32.xlu0 %v147, 120
    %v997 = vpop.permute.xlu0 %996
    %998 = vrot.lane.b32.xlu0 %v147, 88
    %v999 = vpop.permute.xlu0 %998
    %v1000 = vsel %vm153, %v997, 0
    %v1002 = vsel %vm153, %v999, 0
    %1004 = vmatprep.subr.mxu0 0.0
    %1005 = vmatpush1.xpose.msra.mxu0 0.0
    %1006 = vmatprep.subr.mxu0 0.0
    %1007 = vmatpush1.xpose.msra.mxu0 0.0
    %1008 = vmatprep.subr.mxu0 0.0
    %1009 = vmatpush1.xpose.msra.mxu0 0.0
    %1010 = vmatprep.subr.mxu0 0.0
    %1011 = vmatpush1.xpose.msra.mxu0 0.0
    %1012 = vmatprep.subr.mxu0 0.0
    %1013 = vmatpush1.xpose.msra.mxu0 0.0
    %1014 = vmatprep.subr.mxu0 0.0
    %1015 = vmatpush1.xpose.msra.mxu0 0.0
    %1016 = vmatprep.subr.mxu0 0.0
    %1017 = vmatpush1.xpose.msra.mxu0 0.0
    %1018 = vmatprep.subr.mxu0 0.0
    %1019 = vmatpush1.xpose.msra.mxu0 0.0
    %1020 = vmatprep.subr.mxu0 0.0
    %1021 = vmatpush1.xpose.msra.mxu0 0.0
    %1022 = vmatprep.subr.mxu0 0.0
    %1023 = vmatpush1.xpose.msra.mxu0 0.0
    %1024 = vmatprep.subr.mxu0 0.0
    %1025 = vmatpush1.xpose.msra.mxu0 0.0
    %1026 = vmatprep.subr.mxu0 0.0
    %1027 = vmatpush1.xpose.msra.mxu0 0.0
    %1028 = vmatprep.subr.mxu0 0.0
    %1029 = vmatpush1.xpose.msra.mxu0 0.0
    %1030 = vmatprep.subr.mxu0 0.0
    %1031 = vmatpush1.xpose.msra.mxu0 0.0
    %1032 = vmatprep.subr.mxu0 0.0
    %1033 = vmatpush1.xpose.msra.mxu0 0.0
    %1034 = vmatprep.subr.mxu0 0.0
    %1035 = vmatpush1.xpose.msra.mxu0 %v1002
    %1036 = vmatprep.subr.mxu0 0.0
    %1037 = vmatpush2.xpose.msra.mxu0 0.0
    %1038 = vmatprep.subr.mxu0 0.0
    %1039 = vmatpush2.xpose.msra.mxu0 0.0
    %1040 = vmatprep.subr.mxu0 0.0
    %1041 = vmatpush2.xpose.msra.mxu0 0.0
    %1042 = vmatprep.subr.mxu0 0.0
    %1043 = vmatpush2.xpose.msra.mxu0 0.0
    %1044 = vmatprep.subr.mxu0 0.0
    %1045 = vmatpush2.xpose.msra.mxu0 0.0
    %1046 = vmatprep.subr.mxu0 0.0
    %1047 = vmatpush2.xpose.msra.mxu0 0.0
    %1048 = vmatprep.subr.mxu0 0.0
    %1049 = vmatpush2.xpose.msra.mxu0 0.0
    %1050 = vmatprep.subr.mxu0 0.0
    %1051 = vmatpush2.xpose.msra.mxu0 0.0
    %1052 = vmatprep.subr.mxu0 0.0
    %1053 = vmatpush2.xpose.msra.mxu0 0.0
    %1054 = vmatprep.subr.mxu0 0.0
    %1055 = vmatpush2.xpose.msra.mxu0 0.0
    %1056 = vmatprep.subr.mxu0 0.0
    %1057 = vmatpush2.xpose.msra.mxu0 0.0
    %1058 = vmatprep.subr.mxu0 0.0
    %1059 = vmatpush2.xpose.msra.mxu0 0.0
    %1060 = vmatprep.subr.mxu0 0.0
    %1061 = vmatpush2.xpose.msra.mxu0 0.0
    %1062 = vmatprep.subr.mxu0 0.0
    %1063 = vmatpush2.xpose.msra.mxu0 0.0
    %1064 = vmatprep.subr.mxu0 0.0
    %1065 = vmatpush2.xpose.msra.mxu0 0.0
    %1066 = vmatprep.subr.mxu0 0.0
    %1067 = vmatpush2.xpose.msra.mxu0 0.0
    %1068 = vmatprep.mubr.f32.mxu0 0.0
    %1069 = vmatmul.mubr.f32.gmra.mxu0 %v1000
    %v1070 = vpop.f32.mrf.mxu0
    %v1071 = vadd.f32 0.0, %v1070
    %v1072 = vpop.f32.mrf.mxu0
    %1073 = vdwg.mxu0
    %v1074 = vmul.f32 %v1071, 0.35355338
    %v1075 = vsel %vm153, %v1074, -inf
    %1076 = vmax.xlane.f32.xlu0 %v1075
    %v1077 = vpop.xlane.xlu0 %1076
    %v1078 = vsub.f32 %v1074, %v1077
    %v1079 = vmul.f32 %v1078, 1.442695
    %v1080 = vpow.pop %v1079
    %v1081 = vsel %vm153, %v1080, 0.0
    %1082 = vadd.xlane.f32.xlu0 %v1081
    %v1083 = vpop.xlane.xlu0 %1082
    %1084 = vrot.lane.b32.xlu0 %v147, 56
    %v1085 = vpop.permute.xlu0 %1084
    %v1088 = vsel %vm153, %v1080, 0
    %1090 = vmatprep.subr.mxu0 0.0
    %1091 = vmatpush1.msra.mxu0 0.0
    %1092 = vmatprep.subr.mxu0 0.0
    %1093 = vmatpush1.msra.mxu0 0.0
    %1094 = vmatprep.subr.mxu0 0.0
    %1095 = vmatpush1.msra.mxu0 0.0
    %1096 = vmatprep.subr.mxu0 0.0
    %1097 = vmatpush1.msra.mxu0 0.0
    %1098 = vmatprep.subr.mxu0 0.0
    %1099 = vmatpush1.msra.mxu0 0.0
    %1100 = vmatprep.subr.mxu0 0.0
    %1101 = vmatpush1.msra.mxu0 0.0
    %1102 = vmatprep.subr.mxu0 0.0
    %1103 = vmatpush1.msra.mxu0 0.0
    %1104 = vmatprep.subr.mxu0 0.0
    %1105 = vmatpush1.msra.mxu0 0.0
    %1106 = vmatprep.subr.mxu0 0.0
    %1107 = vmatpush1.msra.mxu0 0.0
    %1108 = vmatprep.subr.mxu0 0.0
    %1109 = vmatpush1.msra.mxu0 0.0
    %1110 = vmatprep.subr.mxu0 0.0
    %1111 = vmatpush1.msra.mxu0 0.0
    %1112 = vmatprep.subr.mxu0 0.0
    %1113 = vmatpush1.msra.mxu0 0.0
    %1114 = vmatprep.subr.mxu0 0.0
    %1115 = vmatpush1.msra.mxu0 0.0
    %1116 = vmatprep.subr.mxu0 0.0
    %1117 = vmatpush1.msra.mxu0 0.0
    %1118 = vmatprep.subr.mxu0 0.0
    %1119 = vmatpush1.msra.mxu0 0.0
    %1120 = vmatprep.subr.mxu0 0.0
    %1121 = vmatpush1.msra.mxu0 %v1085
    %1122 = vmatprep.subr.mxu0 0.0
    %1123 = vmatpush2.msra.mxu0 0.0
    %1124 = vmatprep.subr.mxu0 0.0
    %1125 = vmatpush2.msra.mxu0 0.0
    %1126 = vmatprep.subr.mxu0 0.0
    %1127 = vmatpush2.msra.mxu0 0.0
    %1128 = vmatprep.subr.mxu0 0.0
    %1129 = vmatpush2.msra.mxu0 0.0
    %1130 = vmatprep.subr.mxu0 0.0
    %1131 = vmatpush2.msra.mxu0 0.0
    %1132 = vmatprep.subr.mxu0 0.0
    %1133 = vmatpush2.msra.mxu0 0.0
    %1134 = vmatprep.subr.mxu0 0.0
    %1135 = vmatpush2.msra.mxu0 0.0
    %1136 = vmatprep.subr.mxu0 0.0
    %1137 = vmatpush2.msra.mxu0 0.0
    %1138 = vmatprep.subr.mxu0 0.0
    %1139 = vmatpush2.msra.mxu0 0.0
    %1140 = vmatprep.subr.mxu0 0.0
    %1141 = vmatpush2.msra.mxu0 0.0
    %1142 = vmatprep.subr.mxu0 0.0
    %1143 = vmatpush2.msra.mxu0 0.0
    %1144 = vmatprep.subr.mxu0 0.0
    %1145 = vmatpush2.msra.mxu0 0.0
    %1146 = vmatprep.subr.mxu0 0.0
    %1147 = vmatpush2.msra.mxu0 0.0
    %1148 = vmatprep.subr.mxu0 0.0
    %1149 = vmatpush2.msra.mxu0 0.0
    %1150 = vmatprep.subr.mxu0 0.0
    %1151 = vmatpush2.msra.mxu0 0.0
    %1152 = vmatprep.subr.mxu0 0.0
    %1153 = vmatpush2.msra.mxu0 0.0
    %1154 = vmatprep.mubr.f32.mxu0 0.0
    %1155 = vmatmul.mubr.f32.gmra.mxu0 %v1088
    %v1156 = vpop.f32.mrf.mxu0
    %v1157 = vadd.f32 0.0, %v1156
    %v1158 = vpop.f32.mrf.mxu0
    %1159 = vdwg.mxu0
    %v1160 = vrcp.pop %v1083
    %v1161 = vmul.f32 %v1157, %v1160
    %1162 = vrot.lane.b32.xlu0 %v147, 112
    %v1163 = vpop.permute.xlu0 %1162
    %1164 = vrot.lane.b32.xlu0 %v147, 80
    %v1165 = vpop.permute.xlu0 %1164
    %v1166 = vsel %vm153, %v1163, 0
    %v1168 = vsel %vm153, %v1165, 0
    %1170 = vmatprep.subr.mxu0 0.0
    %1171 = vmatpush1.xpose.msra.mxu0 0.0
    %1172 = vmatprep.subr.mxu0 0.0
    %1173 = vmatpush1.xpose.msra.mxu0 0.0
    %1174 = vmatprep.subr.mxu0 0.0
    %1175 = vmatpush1.xpose.msra.mxu0 0.0
    %1176 = vmatprep.subr.mxu0 0.0
    %1177 = vmatpush1.xpose.msra.mxu0 0.0
    %1178 = vmatprep.subr.mxu0 0.0
    %1179 = vmatpush1.xpose.msra.mxu0 0.0
    %1180 = vmatprep.subr.mxu0 0.0
    %1181 = vmatpush1.xpose.msra.mxu0 0.0
    %1182 = vmatprep.subr.mxu0 0.0
    %1183 = vmatpush1.xpose.msra.mxu0 0.0
    %1184 = vmatprep.subr.mxu0 0.0
    %1185 = vmatpush1.xpose.msra.mxu0 0.0
    %1186 = vmatprep.subr.mxu0 0.0
    %1187 = vmatpush1.xpose.msra.mxu0 0.0
    %1188 = vmatprep.subr.mxu0 0.0
    %1189 = vmatpush1.xpose.msra.mxu0 0.0
    %1190 = vmatprep.subr.mxu0 0.0
    %1191 = vmatpush1.xpose.msra.mxu0 0.0
    %1192 = vmatprep.subr.mxu0 0.0
    %1193 = vmatpush1.xpose.msra.mxu0 0.0
    %1194 = vmatprep.subr.mxu0 0.0
    %1195 = vmatpush1.xpose.msra.mxu0 0.0
    %1196 = vmatprep.subr.mxu0 0.0
    %1197 = vmatpush1.xpose.msra.mxu0 0.0
    %1198 = vmatprep.subr.mxu0 0.0
    %1199 = vmatpush1.xpose.msra.mxu0 0.0
    %1200 = vmatprep.subr.mxu0 0.0
    %1201 = vmatpush1.xpose.msra.mxu0 %v1168
    %1202 = vmatprep.subr.mxu0 0.0
    %1203 = vmatpush2.xpose.msra.mxu0 0.0
    %1204 = vmatprep.subr.mxu0 0.0
    %1205 = vmatpush2.xpose.msra.mxu0 0.0
    %1206 = vmatprep.subr.mxu0 0.0
    %1207 = vmatpush2.xpose.msra.mxu0 0.0
    %1208 = vmatprep.subr.mxu0 0.0
    %1209 = vmatpush2.xpose.msra.mxu0 0.0
    %1210 = vmatprep.subr.mxu0 0.0
    %1211 = vmatpush2.xpose.msra.mxu0 0.0
    %1212 = vmatprep.subr.mxu0 0.0
    %1213 = vmatpush2.xpose.msra.mxu0 0.0
    %1214 = vmatprep.subr.mxu0 0.0
    %1215 = vmatpush2.xpose.msra.mxu0 0.0
    %1216 = vmatprep.subr.mxu0 0.0
    %1217 = vmatpush2.xpose.msra.mxu0 0.0
    %1218 = vmatprep.subr.mxu0 0.0
    %1219 = vmatpush2.xpose.msra.mxu0 0.0
    %1220 = vmatprep.subr.mxu0 0.0
    %1221 = vmatpush2.xpose.msra.mxu0 0.0
    %1222 = vmatprep.subr.mxu0 0.0
    %1223 = vmatpush2.xpose.msra.mxu0 0.0
    %1224 = vmatprep.subr.mxu0 0.0
    %1225 = vmatpush2.xpose.msra.mxu0 0.0
    %1226 = vmatprep.subr.mxu0 0.0
    %1227 = vmatpush2.xpose.msra.mxu0 0.0
    %1228 = vmatprep.subr.mxu0 0.0
    %1229 = vmatpush2.xpose.msra.mxu0 0.0
    %1230 = vmatprep.subr.mxu0 0.0
    %1231 = vmatpush2.xpose.msra.mxu0 0.0
    %1232 = vmatprep.subr.mxu0 0.0
    %1233 = vmatpush2.xpose.msra.mxu0 0.0
    %1234 = vmatprep.mubr.f32.mxu0 0.0
    %1235 = vmatmul.mubr.f32.gmra.mxu0 %v1166
    %v1236 = vpop.f32.mrf.mxu0
    %v1237 = vadd.f32 0.0, %v1236
    %v1238 = vpop.f32.mrf.mxu0
    %1239 = vdwg.mxu0
    %v1240 = vmul.f32 %v1237, 0.35355338
    %v1241 = vsel %vm153, %v1240, -inf
    %1242 = vmax.xlane.f32.xlu0 %v1241
    %v1243 = vpop.xlane.xlu0 %1242
    %v1244 = vsub.f32 %v1240, %v1243
    %v1245 = vmul.f32 %v1244, 1.442695
    %v1246 = vpow.pop %v1245
    %v1247 = vsel %vm153, %v1246, 0.0
    %1248 = vadd.xlane.f32.xlu0 %v1247
    %v1249 = vpop.xlane.xlu0 %1248
    %1250 = vrot.lane.b32.xlu0 %v147, 48
    %v1251 = vpop.permute.xlu0 %1250
    %v1254 = vsel %vm153, %v1246, 0
    %1256 = vmatprep.subr.mxu0 0.0
    %1257 = vmatpush1.msra.mxu0 0.0
    %1258 = vmatprep.subr.mxu0 0.0
    %1259 = vmatpush1.msra.mxu0 0.0
    %1260 = vmatprep.subr.mxu0 0.0
    %1261 = vmatpush1.msra.mxu0 0.0
    %1262 = vmatprep.subr.mxu0 0.0
    %1263 = vmatpush1.msra.mxu0 0.0
    %1264 = vmatprep.subr.mxu0 0.0
    %1265 = vmatpush1.msra.mxu0 0.0
    %1266 = vmatprep.subr.mxu0 0.0
    %1267 = vmatpush1.msra.mxu0 0.0
    %1268 = vmatprep.subr.mxu0 0.0
    %1269 = vmatpush1.msra.mxu0 0.0
    %1270 = vmatprep.subr.mxu0 0.0
    %1271 = vmatpush1.msra.mxu0 0.0
    %1272 = vmatprep.subr.mxu0 0.0
    %1273 = vmatpush1.msra.mxu0 0.0
    %1274 = vmatprep.subr.mxu0 0.0
    %1275 = vmatpush1.msra.mxu0 0.0
    %1276 = vmatprep.subr.mxu0 0.0
    %1277 = vmatpush1.msra.mxu0 0.0
    %1278 = vmatprep.subr.mxu0 0.0
    %1279 = vmatpush1.msra.mxu0 0.0
    %1280 = vmatprep.subr.mxu0 0.0
    %1281 = vmatpush1.msra.mxu0 0.0
    %1282 = vmatprep.subr.mxu0 0.0
    %1283 = vmatpush1.msra.mxu0 0.0
    %1284 = vmatprep.subr.mxu0 0.0
    %1285 = vmatpush1.msra.mxu0 0.0
    %1286 = vmatprep.subr.mxu0 0.0
    %1287 = vmatpush1.msra.mxu0 %v1251
    %1288 = vmatprep.subr.mxu0 0.0
    %1289 = vmatpush2.msra.mxu0 0.0
    %1290 = vmatprep.subr.mxu0 0.0
    %1291 = vmatpush2.msra.mxu0 0.0
    %1292 = vmatprep.subr.mxu0 0.0
    %1293 = vmatpush2.msra.mxu0 0.0
    %1294 = vmatprep.subr.mxu0 0.0
    %1295 = vmatpush2.msra.mxu0 0.0
    %1296 = vmatprep.subr.mxu0 0.0
    %1297 = vmatpush2.msra.mxu0 0.0
    %1298 = vmatprep.subr.mxu0 0.0
    %1299 = vmatpush2.msra.mxu0 0.0
    %1300 = vmatprep.subr.mxu0 0.0
    %1301 = vmatpush2.msra.mxu0 0.0
    %1302 = vmatprep.subr.mxu0 0.0
    %1303 = vmatpush2.msra.mxu0 0.0
    %1304 = vmatprep.subr.mxu0 0.0
    %1305 = vmatpush2.msra.mxu0 0.0
    %1306 = vmatprep.subr.mxu0 0.0
    %1307 = vmatpush2.msra.mxu0 0.0
    %1308 = vmatprep.subr.mxu0 0.0
    %1309 = vmatpush2.msra.mxu0 0.0
    %1310 = vmatprep.subr.mxu0 0.0
    %1311 = vmatpush2.msra.mxu0 0.0
    %1312 = vmatprep.subr.mxu0 0.0
    %1313 = vmatpush2.msra.mxu0 0.0
    %1314 = vmatprep.subr.mxu0 0.0
    %1315 = vmatpush2.msra.mxu0 0.0
    %1316 = vmatprep.subr.mxu0 0.0
    %1317 = vmatpush2.msra.mxu0 0.0
    %1318 = vmatprep.subr.mxu0 0.0
    %1319 = vmatpush2.msra.mxu0 0.0
    %1320 = vmatprep.mubr.f32.mxu0 0.0
    %1321 = vmatmul.mubr.f32.gmra.mxu0 %v1254
    %v1322 = vpop.f32.mrf.mxu0
    %v1323 = vadd.f32 0.0, %v1322
    %v1324 = vpop.f32.mrf.mxu0
    %1325 = vdwg.mxu0
    %v1326 = vrcp.pop %v1249
    %v1327 = vmul.f32 %v1323, %v1326
    %1328 = vrot.lane.b32.xlu0 %v147, 104
    %v1329 = vpop.permute.xlu0 %1328
    %1330 = vrot.lane.b32.xlu0 %v147, 72
    %v1331 = vpop.permute.xlu0 %1330
    %v1332 = vsel %vm153, %v1329, 0
    %v1334 = vsel %vm153, %v1331, 0
    %1336 = vmatprep.subr.mxu0 0.0
    %1337 = vmatpush1.xpose.msra.mxu0 0.0
    %1338 = vmatprep.subr.mxu0 0.0
    %1339 = vmatpush1.xpose.msra.mxu0 0.0
    %1340 = vmatprep.subr.mxu0 0.0
    %1341 = vmatpush1.xpose.msra.mxu0 0.0
    %1342 = vmatprep.subr.mxu0 0.0
    %1343 = vmatpush1.xpose.msra.mxu0 0.0
    %1344 = vmatprep.subr.mxu0 0.0
    %1345 = vmatpush1.xpose.msra.mxu0 0.0
    %1346 = vmatprep.subr.mxu0 0.0
    %1347 = vmatpush1.xpose.msra.mxu0 0.0
    %1348 = vmatprep.subr.mxu0 0.0
    %1349 = vmatpush1.xpose.msra.mxu0 0.0
    %1350 = vmatprep.subr.mxu0 0.0
    %1351 = vmatpush1.xpose.msra.mxu0 0.0
    %1352 = vmatprep.subr.mxu0 0.0
    %1353 = vmatpush1.xpose.msra.mxu0 0.0
    %1354 = vmatprep.subr.mxu0 0.0
    %1355 = vmatpush1.xpose.msra.mxu0 0.0
    %1356 = vmatprep.subr.mxu0 0.0
    %1357 = vmatpush1.xpose.msra.mxu0 0.0
    %1358 = vmatprep.subr.mxu0 0.0
    %1359 = vmatpush1.xpose.msra.mxu0 0.0
    %1360 = vmatprep.subr.mxu0 0.0
    %1361 = vmatpush1.xpose.msra.mxu0 0.0
    %1362 = vmatprep.subr.mxu0 0.0
    %1363 = vmatpush1.xpose.msra.mxu0 0.0
    %1364 = vmatprep.subr.mxu0 0.0
    %1365 = vmatpush1.xpose.msra.mxu0 0.0
    %1366 = vmatprep.subr.mxu0 0.0
    %1367 = vmatpush1.xpose.msra.mxu0 %v1334
    %1368 = vmatprep.subr.mxu0 0.0
    %1369 = vmatpush2.xpose.msra.mxu0 0.0
    %1370 = vmatprep.subr.mxu0 0.0
    %1371 = vmatpush2.xpose.msra.mxu0 0.0
    %1372 = vmatprep.subr.mxu0 0.0
    %1373 = vmatpush2.xpose.msra.mxu0 0.0
    %1374 = vmatprep.subr.mxu0 0.0
    %1375 = vmatpush2.xpose.msra.mxu0 0.0
    %1376 = vmatprep.subr.mxu0 0.0
    %1377 = vmatpush2.xpose.msra.mxu0 0.0
    %1378 = vmatprep.subr.mxu0 0.0
    %1379 = vmatpush2.xpose.msra.mxu0 0.0
    %1380 = vmatprep.subr.mxu0 0.0
    %1381 = vmatpush2.xpose.msra.mxu0 0.0
    %1382 = vmatprep.subr.mxu0 0.0
    %1383 = vmatpush2.xpose.msra.mxu0 0.0
    %1384 = vmatprep.subr.mxu0 0.0
    %1385 = vmatpush2.xpose.msra.mxu0 0.0
    %1386 = vmatprep.subr.mxu0 0.0
    %1387 = vmatpush2.xpose.msra.mxu0 0.0
    %1388 = vmatprep.subr.mxu0 0.0
    %1389 = vmatpush2.xpose.msra.mxu0 0.0
    %1390 = vmatprep.subr.mxu0 0.0
    %1391 = vmatpush2.xpose.msra.mxu0 0.0
    %1392 = vmatprep.subr.mxu0 0.0
    %1393 = vmatpush2.xpose.msra.mxu0 0.0
    %1394 = vmatprep.subr.mxu0 0.0
    %1395 = vmatpush2.xpose.msra.mxu0 0.0
    %1396 = vmatprep.subr.mxu0 0.0
    %1397 = vmatpush2.xpose.msra.mxu0 0.0
    %1398 = vmatprep.subr.mxu0 0.0
    %1399 = vmatpush2.xpose.msra.mxu0 0.0
    %1400 = vmatprep.mubr.f32.mxu0 0.0
    %1401 = vmatmul.mubr.f32.gmra.mxu0 %v1332
    %v1402 = vpop.f32.mrf.mxu0
    %v1403 = vadd.f32 0.0, %v1402
    %v1404 = vpop.f32.mrf.mxu0
    %1405 = vdwg.mxu0
    %v1406 = vmul.f32 %v1403, 0.35355338
    %v1407 = vsel %vm153, %v1406, -inf
    %1408 = vmax.xlane.f32.xlu0 %v1407
    %v1409 = vpop.xlane.xlu0 %1408
    %v1410 = vsub.f32 %v1406, %v1409
    %v1411 = vmul.f32 %v1410, 1.442695
    %v1412 = vpow.pop %v1411
    %v1413 = vsel %vm153, %v1412, 0.0
    %1414 = vadd.xlane.f32.xlu0 %v1413
    %v1415 = vpop.xlane.xlu0 %1414
    %1416 = vrot.lane.b32.xlu0 %v147, 40
    %v1417 = vpop.permute.xlu0 %1416
    %v1420 = vsel %vm153, %v1412, 0
    %1422 = vmatprep.subr.mxu0 0.0
    %1423 = vmatpush1.msra.mxu0 0.0
    %1424 = vmatprep.subr.mxu0 0.0
    %1425 = vmatpush1.msra.mxu0 0.0
    %1426 = vmatprep.subr.mxu0 0.0
    %1427 = vmatpush1.msra.mxu0 0.0
    %1428 = vmatprep.subr.mxu0 0.0
    %1429 = vmatpush1.msra.mxu0 0.0
    %1430 = vmatprep.subr.mxu0 0.0
    %1431 = vmatpush1.msra.mxu0 0.0
    %1432 = vmatprep.subr.mxu0 0.0
    %1433 = vmatpush1.msra.mxu0 0.0
    %1434 = vmatprep.subr.mxu0 0.0
    %1435 = vmatpush1.msra.mxu0 0.0
    %1436 = vmatprep.subr.mxu0 0.0
    %1437 = vmatpush1.msra.mxu0 0.0
    %1438 = vmatprep.subr.mxu0 0.0
    %1439 = vmatpush1.msra.mxu0 0.0
    %1440 = vmatprep.subr.mxu0 0.0
    %1441 = vmatpush1.msra.mxu0 0.0
    %1442 = vmatprep.subr.mxu0 0.0
    %1443 = vmatpush1.msra.mxu0 0.0
    %1444 = vmatprep.subr.mxu0 0.0
    %1445 = vmatpush1.msra.mxu0 0.0
    %1446 = vmatprep.subr.mxu0 0.0
    %1447 = vmatpush1.msra.mxu0 0.0
    %1448 = vmatprep.subr.mxu0 0.0
    %1449 = vmatpush1.msra.mxu0 0.0
    %1450 = vmatprep.subr.mxu0 0.0
    %1451 = vmatpush1.msra.mxu0 0.0
    %1452 = vmatprep.subr.mxu0 0.0
    %1453 = vmatpush1.msra.mxu0 %v1417
    %1454 = vmatprep.subr.mxu0 0.0
    %1455 = vmatpush2.msra.mxu0 0.0
    %1456 = vmatprep.subr.mxu0 0.0
    %1457 = vmatpush2.msra.mxu0 0.0
    %1458 = vmatprep.subr.mxu0 0.0
    %1459 = vmatpush2.msra.mxu0 0.0
    %1460 = vmatprep.subr.mxu0 0.0
    %1461 = vmatpush2.msra.mxu0 0.0
    %1462 = vmatprep.subr.mxu0 0.0
    %1463 = vmatpush2.msra.mxu0 0.0
    %1464 = vmatprep.subr.mxu0 0.0
    %1465 = vmatpush2.msra.mxu0 0.0
    %1466 = vmatprep.subr.mxu0 0.0
    %1467 = vmatpush2.msra.mxu0 0.0
    %1468 = vmatprep.subr.mxu0 0.0
    %1469 = vmatpush2.msra.mxu0 0.0
    %1470 = vmatprep.subr.mxu0 0.0
    %1471 = vmatpush2.msra.mxu0 0.0
    %1472 = vmatprep.subr.mxu0 0.0
    %1473 = vmatpush2.msra.mxu0 0.0
    %1474 = vmatprep.subr.mxu0 0.0
    %1475 = vmatpush2.msra.mxu0 0.0
    %1476 = vmatprep.subr.mxu0 0.0
    %1477 = vmatpush2.msra.mxu0 0.0
    %1478 = vmatprep.subr.mxu0 0.0
    %1479 = vmatpush2.msra.mxu0 0.0
    %1480 = vmatprep.subr.mxu0 0.0
    %1481 = vmatpush2.msra.mxu0 0.0
    %1482 = vmatprep.subr.mxu0 0.0
    %1483 = vmatpush2.msra.mxu0 0.0
    %1484 = vmatprep.subr.mxu0 0.0
    %1485 = vmatpush2.msra.mxu0 0.0
    %1486 = vmatprep.mubr.f32.mxu0 0.0
    %1487 = vmatmul.mubr.f32.gmra.mxu0 %v1420
    %v1488 = vpop.f32.mrf.mxu0
    %v1489 = vadd.f32 0.0, %v1488
    %v1490 = vpop.f32.mrf.mxu0
    %1491 = vdwg.mxu0
    %v1492 = vrcp.pop %v1415
    %v1493 = vmul.f32 %v1489, %v1492
    %1495 = vrot.lane.b32.xlu0 %v1161, 8
    %v1496 = vpop.permute.xlu0 %1495
    %1499 = vrot.lane.b32.xlu0 %v1327, 16
    %v1500 = vpop.permute.xlu0 %1499
    %1503 = vrot.lane.b32.xlu0 %v1493, 24
    %v1504 = vpop.permute.xlu0 %1503
    %v1506 = vsel %vm153, %v995, %v1496
    %v1507 = vsel %vm827, %v1506, %v1500
    %v1508 = vsel %vm829, %v1507, %v1504
    %v1509 = vld [vmem:[%s2] sm:$0xff]
    %v1510 = vld [vmem:[%s2 + $0x8] sm:$0xff]
    %v1511 = vld [vmem:[%s2 + $0x10] sm:$0xff]
    %v1512 = vld [vmem:[%s2 + $0x18] sm:$0xff]
    %v1513 = vld [vmem:[%s3] sm:$0x1]
    %v1515 = vlaneseq
    %v1516 = vshrl.u32 %v1515, 7
    %v1517 = vsub.s32 0, %v1516
    %v1518 = vrot.slane %v1513, %v1517
    %v1521 = vsel %vm32, %v830, 0
    %v1524 = vsel %vm32, %v1508, 0
    %v1527 = vsel %vm32, %v1509, 0
    %v1530 = vsel %vm32, %v1510, 0
    %v1533 = vsel %vm32, %v1511, 0
    %v1536 = vsel %vm32, %v1512, 0
    %1538 = vmatprep.subr.mxu0 0.0
    %1539 = vmatpush1.xpose.msra.mxu0 0.0
    %1540 = vmatprep.subr.mxu0 0.0
    %1541 = vmatpush1.xpose.msra.mxu0 0.0
    %1542 = vmatprep.subr.mxu0 0.0
    %1543 = vmatpush1.xpose.msra.mxu0 0.0
    %1544 = vmatprep.subr.mxu0 0.0
    %1545 = vmatpush1.xpose.msra.mxu0 0.0
    %1546 = vmatprep.subr.mxu0 0.0
    %1547 = vmatpush1.xpose.msra.mxu0 0.0
    %1548 = vmatprep.subr.mxu0 0.0
    %1549 = vmatpush1.xpose.msra.mxu0 0.0
    %1550 = vmatprep.subr.mxu0 0.0
    %1551 = vmatpush1.xpose.msra.mxu0 0.0
    %1552 = vmatprep.subr.mxu0 0.0
    %1553 = vmatpush1.xpose.msra.mxu0 0.0
    %1554 = vmatprep.subr.mxu0 0.0
    %1555 = vmatpush1.xpose.msra.mxu0 0.0
    %1556 = vmatprep.subr.mxu0 0.0
    %1557 = vmatpush1.xpose.msra.mxu0 0.0
    %1558 = vmatprep.subr.mxu0 0.0
    %1559 = vmatpush1.xpose.msra.mxu0 0.0
    %1560 = vmatprep.subr.mxu0 0.0
    %1561 = vmatpush1.xpose.msra.mxu0 0.0
    %1562 = vmatprep.subr.mxu0 0.0
    %1563 = vmatpush1.xpose.msra.mxu0 %v1536
    %1564 = vmatprep.subr.mxu0 0.0
    %1565 = vmatpush1.xpose.msra.mxu0 %v1533
    %1566 = vmatprep.subr.mxu0 0.0
    %1567 = vmatpush1.xpose.msra.mxu0 %v1530
    %1568 = vmatprep.subr.mxu0 0.0
    %1569 = vmatpush1.xpose.msra.mxu0 %v1527
    %1570 = vmatprep.subr.mxu0 0.0
    %1571 = vmatpush2.xpose.msra.mxu0 0.0
    %1572 = vmatprep.subr.mxu0 0.0
    %1573 = vmatpush2.xpose.msra.mxu0 0.0
    %1574 = vmatprep.subr.mxu0 0.0
    %1575 = vmatpush2.xpose.msra.mxu0 0.0
    %1576 = vmatprep.subr.mxu0 0.0
    %1577 = vmatpush2.xpose.msra.mxu0 0.0
    %1578 = vmatprep.subr.mxu0 0.0
    %1579 = vmatpush2.xpose.msra.mxu0 0.0
    %1580 = vmatprep.subr.mxu0 0.0
    %1581 = vmatpush2.xpose.msra.mxu0 0.0
    %1582 = vmatprep.subr.mxu0 0.0
    %1583 = vmatpush2.xpose.msra.mxu0 0.0
    %1584 = vmatprep.subr.mxu0 0.0
    %1585 = vmatpush2.xpose.msra.mxu0 0.0
    %1586 = vmatprep.subr.mxu0 0.0
    %1587 = vmatpush2.xpose.msra.mxu0 0.0
    %1588 = vmatprep.subr.mxu0 0.0
    %1589 = vmatpush2.xpose.msra.mxu0 0.0
    %1590 = vmatprep.subr.mxu0 0.0
    %1591 = vmatpush2.xpose.msra.mxu0 0.0
    %1592 = vmatprep.subr.mxu0 0.0
    %1593 = vmatpush2.xpose.msra.mxu0 0.0
    %1594 = vmatprep.subr.mxu0 0.0
    %1595 = vmatpush2.xpose.msra.mxu0 0.0
    %1596 = vmatprep.subr.mxu0 0.0
    %1597 = vmatpush2.xpose.msra.mxu0 0.0
    %1598 = vmatprep.subr.mxu0 0.0
    %1599 = vmatpush2.xpose.msra.mxu0 0.0
    %1600 = vmatprep.subr.mxu0 0.0
    %1601 = vmatpush2.xpose.msra.mxu0 0.0
    %1602 = vmatprep.mubr.f32.mxu0 0.0
    %1603 = vmatmul.mubr.f32.gmra.mxu0 %v1521
    %v1604 = vpop.f32.mrf.mxu0
    %v1605 = vadd.f32 %v1518, %v1604
    %v1606 = vpop.f32.mrf.mxu0
    %1607 = vmatprep.mubr.f32.mxu0 0.0
    %1608 = vmatmul.mubr.f32.gmra.mxu0 %v1524
    %v1609 = vpop.f32.mrf.mxu0
    %v1610 = vadd.f32 %v1518, %v1609
    %v1611 = vpop.f32.mrf.mxu0
    %1612 = vdwg.mxu0
    %1613 = vst.msk [vmem:[#allocation2] sm:$0xff] %vm32, %v1605
    %1614 = vst.msk [vmem:[#allocation2 + $0x8] sm:$0xff] %vm32, %v1610
    // Predicated region
    $region18: #{tpu_custom_call.1} parent=1 // pred_check
      _
    $region19: #{tpu_custom_call.1} parent=1 // pred_check_branch
      %1616 = sbr.rel (0) target = $region21
    $region20: #{tpu_custom_call.1} parent=1 // pred_region
      %s1618 = ssub.s32 256, 256
      %1619 = vsyncadd [#allocation3], %s1618
      %s1620 = sshll.u32 [#allocation2], 4
      %s1621 = int_to_ptr.vmem [resolvable:$true] %s1620
      %1626 = dma.vmem_to_hbm [thread:$0]  %s1621, 256, %s4, [#allocation3], 128, 128, 8
    $region21: #{tpu_custom_call.1} parent=1 // pred_fallthru
      _
    // Predicated region
    $region22: #{tpu_custom_call.1} parent=1 // pred_check
      _
    $region23: #{tpu_custom_call.1} parent=1 // pred_check_branch
      %1628 = sbr.rel (0) target = $region25
    $region24: #{tpu_custom_call.1} parent=1 // pred_region
      %1629 = dma.done [#allocation3], 256
    $region25: #{tpu_custom_call.1} parent=1 // pred_fallthru
      _
    %1630 = vsyncpa [#allocation3], 1

</llo_original>
